<compile_context>
chip_gen: v5e
topology: v5e:2x2
jax: 0.10.0
libtpu: 0.0.40
codegen_flags: <defaults>
</compile_context>

<pallas_src>
import functools

import jax
import jax.numpy as jnp
from jax.experimental import pallas as pl
from jax.experimental.pallas import tpu as pltpu

_LANE = 128
_SUBLANE = 8


def _round_up(n, m):
    return -(-n // m) * m


def _vmem_budget_bytes():
    """Generation-aware VMEM budget: ~75% of physical capacity.

    -> ~96 MiB on v5e/v6e (128 MiB physical), ~48 MiB on v7x (64 MiB physical).
    """
    try:
        phys = int(pltpu.get_tpu_info().vmem_capacity_bytes)
    except Exception:
        phys = 0
    if phys <= 0:
        phys = 64 * 1024 * 1024          # conservative (v7x-sized) fallback
    return max(32 * 1024 * 1024, (phys * 3) // 4)


# ---------------------------------------------------------------------------
# Kernels
# ---------------------------------------------------------------------------
def _ln_tanh_epilogue(y, p_ref, o_ref, f_valid):
    """Shared f32 LayerNorm + tanh epilogue.

    p_ref rows: 0 = linear bias, 1 = LN gamma, 2 = LN beta; all are zero in the
    padded feature lanes, so unmasked lane sums equal sums over the true
    `f_valid` features and padded output lanes come out exactly zero.
    """
    y = y + p_ref[0:1, :]                                 # bias (f32)
    inv_f = jnp.float32(1.0 / f_valid)
    # NOTE: if a bundle dump shows these two cross-lane reductions saturating
    # the XLU, they can be offloaded to the MXU (row-sum column in W^T).
    mean = jnp.sum(y, axis=-1, keepdims=True) * inv_f
    mean_sq = jnp.sum(y * y, axis=-1, keepdims=True) * inv_f
    var = jnp.maximum(mean_sq - mean * mean, 0.0)         # E[y^2] - E[y]^2
    y_norm = (y - mean) * jax.lax.rsqrt(var + 1e-5)
    y_norm = y_norm * p_ref[1:2, :] + p_ref[2:3, :]       # gamma / beta
    o_ref[...] = jnp.tanh(y_norm).astype(o_ref.dtype)


def _l_l_t_kernel(x_ref, wt_ref, p_ref, o_ref, *, f_valid, precision):
    # x_ref: (tm, K) input-row tile | wt_ref: (K, F_pad) resident W^T
    # p_ref: (8, F_pad) packed bias/gamma/beta | o_ref: (tm, F_pad) output
    y = jnp.dot(x_ref[...], wt_ref[...],
                preferred_element_type=jnp.float32, precision=precision)
    _ln_tanh_epilogue(y, p_ref, o_ref, f_valid)


def _l_l_t_kernel_ktiled(x_ref, wt_ref, p_ref, o_ref, acc_ref, *, f_valid, precision):
    # K-reduction grid axis: accumulate into f32 scratch, finalize at last k.
    kk = pl.program_id(1)

    @pl.when(kk == 0)
    def _():
        acc_ref[...] = jnp.zeros_like(acc_ref)

    acc_ref[...] += jnp.dot(x_ref[...], wt_ref[...],
                            preferred_element_type=jnp.float32, precision=precision)

    @pl.when(kk == pl.num_programs(1) - 1)
    def _():
        _ln_tanh_epilogue(acc_ref[...], p_ref, o_ref, f_valid)


# ---------------------------------------------------------------------------
# One-time parameter layout prep (keep out of the per-call path)
# ---------------------------------------------------------------------------
def prepare_params(weight, bias, gamma, beta):
    """weight: [out_features, in_features] (PyTorch layout) -> W^T [K, F_pad];
    bias/gamma/beta packed into one (8, F_pad) f32 slab (rows 0/1/2)."""
    f, k = weight.shape
    f_pad = _round_up(f, _LANE)
    w_t = jnp.zeros((k, f_pad), weight.dtype).at[:, :f].set(weight.T)
    p = jnp.zeros((8, f_pad), jnp.float32)
    p = p.at[0, :f].set(bias.astype(jnp.float32))
    p = p.at[1, :f].set(gamma.astype(jnp.float32))
    p = p.at[2, :f].set(beta.astype(jnp.float32))
    return w_t, p


def _vmem_estimate_bytes(tm, k_block, f_pad, x_it, w_it, o_it, w_bufs):
    return (w_bufs * k_block * f_pad * w_it      # W^T blocks (1 buf when resident)
            + 2 * tm * k_block * x_it            # double-buffered x tiles
            + 2 * tm * f_pad * o_it              # double-buffered output tiles
            + 2 * 8 * f_pad * 4                  # packed bias/gamma/beta slab
            + 4 * tm * f_pad * 4)                # live f32 temporaries / accumulator


# ---------------------------------------------------------------------------
# Forward
# ---------------------------------------------------------------------------
def l_l_t_forward(x, w_t_pad, params_pad, out_features, *, tm=512,
                  force_ktiled=None, return_padded=False):
    """x: [N, in_features]; (w_t_pad, params_pad) from prepare_params().

    For best throughput feed x / w_t_pad in bf16 (f32 accumulation is kept).
    """
    n, k = x.shape
    kw, f_pad = w_t_pad.shape
    assert kw == k, "weight in_features mismatch"
    assert params_pad.shape == (8, f_pad), "params slab shape mismatch"

    x_it = jnp.dtype(x.dtype).itemsize
    w_it = jnp.dtype(w_t_pad.dtype).itemsize
    o_it = x_it

    budget = _vmem_budget_bytes()

    # f32 operands -> exact (HIGHEST) MXU matmul; bf16 runs at native speed.
    f32_ops = (jnp.dtype(x.dtype) == jnp.float32
               and jnp.dtype(w_t_pad.dtype) == jnp.float32)
    precision = jax.lax.Precision.HIGHEST if f32_ops else None

    # ---- path selection: resident W^T vs K-tiled accumulation ---------------
    resident_w_bytes = k * f_pad * w_it
    use_ktiled = force_ktiled
    if use_ktiled is None:
        use_ktiled = resident_w_bytes > budget // 3
    tk = None
    if use_ktiled:
        for cand in (512, 256, 128):            # prefer >=2 K steps
            if k % cand == 0 and k // cand >= 2:
                tk = cand
                break
        if tk is None:
            for cand in (512, 256, 128):
                if k % cand == 0:
                    tk = cand
                    break
        if tk is None:
            use_ktiled = False                  # K not 128-aligned: fall back

    k_block = tk if use_ktiled else k
    w_bufs = 2 if use_ktiled else 1             # resident W^T is single-buffered

    # ---- row-tile selection (no forced multi-step split) --------------------
    # TODO(synk): on v7x consider >=4 grid steps / CORE_PARALLEL so both
    # TensorCores get >=2 pipeline stages each.
    tm_eff = max(_SUBLANE, min(_round_up(tm, _SUBLANE), _round_up(n, _SUBLANE)))
    while (tm_eff > _SUBLANE
           and _vmem_estimate_bytes(tm_eff, k_block, f_pad, x_it, w_it, o_it,
                                    w_bufs) > budget):
        tm_eff = max(_SUBLANE, (tm_eff // 2 // _SUBLANE) * _SUBLANE)

    grid_rows = pl.cdiv(n, tm_eff)   # partial last tile handled by Pallas (no jnp.pad)
    vmem_limit = int(budget)         # honest limit: let Mosaic use the headroom

    if use_ktiled:
        kernel = functools.partial(_l_l_t_kernel_ktiled,
                                   f_valid=out_features, precision=precision)
        out = pl.pallas_call(
            kernel,
            out_shape=jax.ShapeDtypeStruct((n, f_pad), x.dtype),
            grid_spec=pltpu.PrefetchScalarGridSpec(
                num_scalar_prefetch=0,
                grid=(grid_rows, k // tk),
                in_specs=[
                    pl.BlockSpec((tm_eff, tk), lambda i, kk: (i, kk)),   # x tile
                    pl.BlockSpec((tk, f_pad), lambda i, kk: (kk, 0)),    # W^T block
                    pl.BlockSpec((8, f_pad), lambda i, kk: (0, 0)),      # params
                ],
                out_specs=pl.BlockSpec((tm_eff, f_pad), lambda i, kk: (i, 0)),
                scratch_shapes=[pltpu.VMEM((tm_eff, f_pad), jnp.float32)],
            ),
            compiler_params=pltpu.CompilerParams(
                dimension_semantics=("parallel", "arbitrary"),
                vmem_limit_bytes=vmem_limit,
            ),
        )(x, w_t_pad, params_pad)
    else:
        kernel = functools.partial(_l_l_t_kernel,
                                   f_valid=out_features, precision=precision)

        def build(single_buffer_consts):
            const_kw = {"pipeline_mode": pl.Buffered(1)} if single_buffer_consts else {}
            return pl.pallas_call(
                kernel,
                out_shape=jax.ShapeDtypeStruct((n, f_pad), x.dtype),
                grid_spec=pltpu.PrefetchScalarGridSpec(
                    num_scalar_prefetch=0,
                    grid=(grid_rows,),
                    in_specs=[
                        pl.BlockSpec((tm_eff, k), lambda i: (i, 0)),              # x tile
                        pl.BlockSpec((k, f_pad), lambda i: (0, 0), **const_kw),   # W^T
                        pl.BlockSpec((8, f_pad), lambda i: (0, 0), **const_kw),   # params
                    ],
                    out_specs=pl.BlockSpec((tm_eff, f_pad), lambda i: (i, 0)),
                ),
                compiler_params=pltpu.CompilerParams(
                    dimension_semantics=("parallel",),
                    vmem_limit_bytes=vmem_limit,
                ),
            )

        try:
            out = build(True)(x, w_t_pad, params_pad)
        except Exception:
            # Only the Buffered(1) attempt is guarded; if this default-buffered
            # build also fails the genuine error propagates from here.
            out = build(False)(x, w_t_pad, params_pad)

    if return_padded or f_pad == out_features:
        return out
    # NOTE: this column trim is an extra HBM copy; consumers that tolerate
    # zero-padded feature lanes (they are exact zeros) should use
    # return_padded=True or fuse the slice into their own computation.
    return out[:, :out_features]


def init_params(key, in_features, out_features):
    """Matches the module's initialize_weights: xavier_uniform weight, zero
    bias, LayerNorm gamma=1 / beta=0."""
    limit = (6.0 / (in_features + out_features)) ** 0.5
    weight = jax.random.uniform(key, (out_features, in_features),
                                minval=-limit, maxval=limit, dtype=jnp.float32)
    bias = jnp.zeros((out_features,), jnp.float32)
    gamma = jnp.ones((out_features,), jnp.float32)
    beta = jnp.zeros((out_features,), jnp.float32)
    return weight, bias, gamma, beta


if __name__ == "__main__":
    # TODO(synk): SparseTensor wrapper (input.replace) has no Pallas analog;
    # the kernel operates directly on the dense feats matrix.
    def reference(x, weight, bias, gamma, beta):
        y = jnp.matmul(x, weight.T, precision=jax.lax.Precision.HIGHEST) + bias
        mean = y.mean(-1, keepdims=True)
        var = ((y - mean) ** 2).mean(-1, keepdims=True)
        return jnp.tanh((y - mean) / jnp.sqrt(var + 1e-5) * gamma + beta)

    key = jax.random.PRNGKey(0)
    k1, k2, k3, k4 = jax.random.split(key, 4)

    # ---- Test 1: resident-weight path, partial last row tile ---------------
    n1, in1, out1 = 100, 32, 32
    x1 = jax.random.normal(k1, (n1, in1), dtype=jnp.float32)
    w1, b1, g1, be1 = init_params(k2, in1, out1)
    wt1, p1 = prepare_params(w1, b1, g1, be1)
    o1 = jax.block_until_ready(l_l_t_forward(x1, wt1, p1, out1, tm=512))
    r1 = reference(x1, w1, b1, g1, be1)
    assert o1.shape == r1.shape, "shape mismatch vs reference (test 1)"
    assert jnp.allclose(o1, r1, atol=5e-5, rtol=5e-5), "mismatch vs reference (test 1)"

    # ---- Test 2: K-tiled accumulation path, padded feature lanes -----------
    n2, in2, out2 = 64, 256, 48
    x2 = jax.random.normal(k3, (n2, in2), dtype=jnp.float32)
    w2, b2, g2, be2 = init_params(k4, in2, out2)
    wt2, p2 = prepare_params(w2, b2, g2, be2)
    o2 = jax.block_until_ready(l_l_t_forward(x2, wt2, p2, out2, force_ktiled=True))
    r2 = reference(x2, w2, b2, g2, be2)
    assert o2.shape == r2.shape, "shape mismatch vs reference (test 2)"
    assert jnp.allclose(o2, r2, atol=5e-5, rtol=5e-5), "mismatch vs reference (test 2)"

    print("KERNEL_OK")
</pallas_src>

<mosaic_0001>
module attributes {stable_mosaic.version = 11 : i64} {
  func.func @_l_l_t_kernel(%arg0: i32, %arg1: memref<104x32xf32, #tpu.memory_space<vmem>>, %arg2: memref<32x128xf32, #tpu.memory_space<vmem>>, %arg3: memref<8x128xf32, #tpu.memory_space<vmem>>, %arg4: memref<104x128xf32, #tpu.memory_space<vmem>>) attributes {dimension_semantics = [#tpu.dimension_semantics<parallel>], iteration_bounds = array<i64: 1>, scalar_prefetch = 0 : i64, scratch_operands = 0 : i64, tpu.core_type = #tpu.core_type<tc>, window_params = [{transform_indices = @transform_0, window_bounds = array<i64: 104, 32>}, {pipeline_mode = #tpu.pipeline_mode<synchronous>, transform_indices = @transform_1, window_bounds = array<i64: 32, 128>}, {pipeline_mode = #tpu.pipeline_mode<synchronous>, transform_indices = @transform_2, window_bounds = array<i64: 8, 128>}, {transform_indices = @transform_3, window_bounds = array<i64: 104, 128>}]} {
    %c0 = arith.constant 0 : index
    %c0_0 = arith.constant 0 : index
    %0 = vector.load %arg1[%c0, %c0_0] : memref<104x32xf32, #tpu.memory_space<vmem>>, vector<104x32xf32>
    %c0_1 = arith.constant 0 : index
    %c0_2 = arith.constant 0 : index
    %1 = vector.load %arg2[%c0_1, %c0_2] : memref<32x128xf32, #tpu.memory_space<vmem>>, vector<32x128xf32>
    %cst = arith.constant dense<0.000000e+00> : vector<104x128xf32>
    %2 = tpu.matmul %0, %1, %cst {dimension_numbers = #tpu.dot_dimension_numbers<[1], [0], [0], [1], [0, 0, 1, 1], [], []>, precision = #tpu.contract_precision<fp32>} : vector<104x32xf32>, vector<32x128xf32>, vector<104x128xf32> -> vector<104x128xf32>
    %c0_3 = arith.constant 0 : index
    %c0_4 = arith.constant 0 : index
    %3 = vector.load %arg3[%c0_3, %c0_4] : memref<8x128xf32, #tpu.memory_space<vmem>>, vector<1x128xf32>
    %4 = vector.broadcast %3 : vector<1x128xf32> to vector<104x128xf32>
    %5 = arith.addf %2, %4 : vector<104x128xf32>
    %cst_5 = arith.constant dense<0.000000e+00> : vector<104xf32>
    %6 = vector.multi_reduction <add>, %5, %cst_5 [1] : vector<104x128xf32> to vector<104xf32>
    %7 = vector.shape_cast %6 : vector<104xf32> to vector<104x1xf32>
    %cst_6 = arith.constant 3.125000e-02 : f32
    %8 = vector.broadcast %cst_6 : f32 to vector<104x1xf32>
    %9 = arith.mulf %7, %8 : vector<104x1xf32>
    %10 = arith.mulf %5, %5 : vector<104x128xf32>
    %cst_7 = arith.constant dense<0.000000e+00> : vector<104xf32>
    %11 = vector.multi_reduction <add>, %10, %cst_7 [1] : vector<104x128xf32> to vector<104xf32>
    %12 = vector.shape_cast %11 : vector<104xf32> to vector<104x1xf32>
    %cst_8 = arith.constant 3.125000e-02 : f32
    %13 = vector.broadcast %cst_8 : f32 to vector<104x1xf32>
    %14 = arith.mulf %12, %13 : vector<104x1xf32>
    %15 = arith.mulf %9, %9 : vector<104x1xf32>
    %16 = arith.subf %14, %15 : vector<104x1xf32>
    %cst_9 = arith.constant 0.000000e+00 : f32
    %17 = vector.broadcast %cst_9 : f32 to vector<104x1xf32>
    %18 = arith.maximumf %16, %17 : vector<104x1xf32>
    %19 = vector.broadcast %9 : vector<104x1xf32> to vector<104x128xf32>
    %20 = arith.subf %5, %19 : vector<104x128xf32>
    %cst_10 = arith.constant 9.99999974E-6 : f32
    %21 = vector.broadcast %cst_10 : f32 to vector<104x1xf32>
    %22 = arith.addf %18, %21 : vector<104x1xf32>
    %23 = math.rsqrt %22 : vector<104x1xf32>
    %24 = vector.broadcast %23 : vector<104x1xf32> to vector<104x128xf32>
    %25 = arith.mulf %20, %24 : vector<104x128xf32>
    %c1 = arith.constant 1 : index
    %c0_11 = arith.constant 0 : index
    %26 = vector.load %arg3[%c1, %c0_11] : memref<8x128xf32, #tpu.memory_space<vmem>>, vector<1x128xf32>
    %27 = vector.broadcast %26 : vector<1x128xf32> to vector<104x128xf32>
    %28 = arith.mulf %25, %27 : vector<104x128xf32>
    %c2 = arith.constant 2 : index
    %c0_12 = arith.constant 0 : index
    %29 = vector.load %arg3[%c2, %c0_12] : memref<8x128xf32, #tpu.memory_space<vmem>>, vector<1x128xf32>
    %30 = vector.broadcast %29 : vector<1x128xf32> to vector<104x128xf32>
    %31 = arith.addf %28, %30 : vector<104x128xf32>
    %32 = math.tanh %31 : vector<104x128xf32>
    %c0_13 = arith.constant 0 : index
    %c0_14 = arith.constant 0 : index
    %33 = vector.load %arg4[%c0_13, %c0_14] : memref<104x128xf32, #tpu.memory_space<vmem>>, vector<104x128xf32>
    tpu.vector_store %arg4[%c0_13, %c0_14], %32 {strides = array<i32>} : memref<104x128xf32, #tpu.memory_space<vmem>>, vector<104x128xf32>,
    return
  }
  func.func @transform_0(%arg0: i32) -> (i32, i32) {
    %c0_i32 = arith.constant 0 : i32
    %c0_i32_0 = arith.constant 0 : i32
    return %arg0, %c0_i32 : i32, i32
  }
  func.func @transform_1(%arg0: i32) -> (i32, i32) {
    %c0_i32 = arith.constant 0 : i32
    %c0_i32_0 = arith.constant 0 : i32
    %c0_i32_1 = arith.constant 0 : i32
    return %c0_i32, %c0_i32_0 : i32, i32
  }
  func.func @transform_2(%arg0: i32) -> (i32, i32) {
    %c0_i32 = arith.constant 0 : i32
    %c0_i32_0 = arith.constant 0 : i32
    %c0_i32_1 = arith.constant 0 : i32
    return %c0_i32, %c0_i32_0 : i32, i32
  }
  func.func @transform_3(%arg0: i32) -> (i32, i32) {
    %c0_i32 = arith.constant 0 : i32
    %c0_i32_0 = arith.constant 0 : i32
    return %arg0, %c0_i32 : i32, i32
  }
}

module attributes {stable_mosaic.version = 11 : i64} {
  func.func @_l_l_t_kernel(%arg0: i32, %arg1: memref<104x32xf32, #tpu.memory_space<vmem>>, %arg2: memref<32x128xf32, #tpu.memory_space<vmem>>, %arg3: memref<8x128xf32, #tpu.memory_space<vmem>>, %arg4: memref<104x128xf32, #tpu.memory_space<vmem>>) attributes {dimension_semantics = [#tpu.dimension_semantics<parallel>], iteration_bounds = array<i64: 1>, scalar_prefetch = 0 : i64, scratch_operands = 0 : i64, tpu.core_type = #tpu.core_type<tc>, window_params = [{transform_indices = @transform_0, window_bounds = array<i64: 104, 32>}, {pipeline_mode = #tpu.pipeline_mode<synchronous>, transform_indices = @transform_1, window_bounds = array<i64: 32, 128>}, {pipeline_mode = #tpu.pipeline_mode<synchronous>, transform_indices = @transform_2, window_bounds = array<i64: 8, 128>}, {transform_indices = @transform_3, window_bounds = array<i64: 104, 128>}]} {
    %c0 = arith.constant 0 : index
    %c0_0 = arith.constant 0 : index
    %0 = vector.load %arg1[%c0, %c0_0] : memref<104x32xf32, #tpu.memory_space<vmem>>, vector<104x32xf32>
    %c0_1 = arith.constant 0 : index
    %c0_2 = arith.constant 0 : index
    %1 = vector.load %arg2[%c0_1, %c0_2] : memref<32x128xf32, #tpu.memory_space<vmem>>, vector<32x128xf32>
    %cst = arith.constant dense<0.000000e+00> : vector<104x128xf32>
    %2 = tpu.matmul %0, %1, %cst {dimension_numbers = #tpu.dot_dimension_numbers<[1], [0], [0], [1], [0, 0, 1, 1], [], []>, precision = #tpu.contract_precision<fp32>} : vector<104x32xf32>, vector<32x128xf32>, vector<104x128xf32> -> vector<104x128xf32>
    %c0_3 = arith.constant 0 : index
    %c0_4 = arith.constant 0 : index
    %3 = vector.load %arg3[%c0_3, %c0_4] : memref<8x128xf32, #tpu.memory_space<vmem>>, vector<1x128xf32>
    %4 = vector.broadcast %3 : vector<1x128xf32> to vector<104x128xf32>
    %5 = arith.addf %2, %4 : vector<104x128xf32>
    %cst_5 = arith.constant dense<0.000000e+00> : vector<104xf32>
    %6 = vector.multi_reduction <add>, %5, %cst_5 [1] : vector<104x128xf32> to vector<104xf32>
    %7 = vector.shape_cast %6 : vector<104xf32> to vector<104x1xf32>
    %cst_6 = arith.constant 3.125000e-02 : f32
    %8 = vector.broadcast %cst_6 : f32 to vector<104x1xf32>
    %9 = arith.mulf %7, %8 : vector<104x1xf32>
    %10 = arith.mulf %5, %5 : vector<104x128xf32>
    %cst_7 = arith.constant dense<0.000000e+00> : vector<104xf32>
    %11 = vector.multi_reduction <add>, %10, %cst_7 [1] : vector<104x128xf32> to vector<104xf32>
    %12 = vector.shape_cast %11 : vector<104xf32> to vector<104x1xf32>
    %cst_8 = arith.constant 3.125000e-02 : f32
    %13 = vector.broadcast %cst_8 : f32 to vector<104x1xf32>
    %14 = arith.mulf %12, %13 : vector<104x1xf32>
    %15 = arith.mulf %9, %9 : vector<104x1xf32>
    %16 = arith.subf %14, %15 : vector<104x1xf32>
    %cst_9 = arith.constant 0.000000e+00 : f32
    %17 = vector.broadcast %cst_9 : f32 to vector<104x1xf32>
    %18 = arith.maximumf %16, %17 : vector<104x1xf32>
    %19 = vector.broadcast %9 : vector<104x1xf32> to vector<104x128xf32>
    %20 = arith.subf %5, %19 : vector<104x128xf32>
    %cst_10 = arith.constant 9.99999974E-6 : f32
    %21 = vector.broadcast %cst_10 : f32 to vector<104x1xf32>
    %22 = arith.addf %18, %21 : vector<104x1xf32>
    %23 = math.rsqrt %22 : vector<104x1xf32>
    %24 = vector.broadcast %23 : vector<104x1xf32> to vector<104x128xf32>
    %25 = arith.mulf %20, %24 : vector<104x128xf32>
    %c1 = arith.constant 1 : index
    %c0_11 = arith.constant 0 : index
    %26 = vector.load %arg3[%c1, %c0_11] : memref<8x128xf32, #tpu.memory_space<vmem>>, vector<1x128xf32>
    %27 = vector.broadcast %26 : vector<1x128xf32> to vector<104x128xf32>
    %28 = arith.mulf %25, %27 : vector<104x128xf32>
    %c2 = arith.constant 2 : index
    %c0_12 = arith.constant 0 : index
    %29 = vector.load %arg3[%c2, %c0_12] : memref<8x128xf32, #tpu.memory_space<vmem>>, vector<1x128xf32>
    %30 = vector.broadcast %29 : vector<1x128xf32> to vector<104x128xf32>
    %31 = arith.addf %28, %30 : vector<104x128xf32>
    %32 = math.tanh %31 : vector<104x128xf32>
    %c0_13 = arith.constant 0 : index
    %c0_14 = arith.constant 0 : index
    %33 = vector.load %arg4[%c0_13, %c0_14] : memref<104x128xf32, #tpu.memory_space<vmem>>, vector<104x128xf32>
    tpu.vector_store %arg4[%c0_13, %c0_14], %32 {strides = array<i32>} : memref<104x128xf32, #tpu.memory_space<vmem>>, vector<104x128xf32>,
    return
  }
  func.func @transform_0(%arg0: i32) -> (i32, i32) {
    %c0_i32 = arith.constant 0 : i32
    %c0_i32_0 = arith.constant 0 : i32
    return %arg0, %c0_i32 : i32, i32
  }
  func.func @transform_1(%arg0: i32) -> (i32, i32) {
    %c0_i32 = arith.constant 0 : i32
    %c0_i32_0 = arith.constant 0 : i32
    %c0_i32_1 = arith.constant 0 : i32
    return %c0_i32, %c0_i32_0 : i32, i32
  }
  func.func @transform_2(%arg0: i32) -> (i32, i32) {
    %c0_i32 = arith.constant 0 : i32
    %c0_i32_0 = arith.constant 0 : i32
    %c0_i32_1 = arith.constant 0 : i32
    return %c0_i32, %c0_i32_0 : i32, i32
  }
  func.func @transform_3(%arg0: i32) -> (i32, i32) {
    %c0_i32 = arith.constant 0 : i32
    %c0_i32_0 = arith.constant 0 : i32
    return %arg0, %c0_i32 : i32, i32
  }
}

</mosaic_0001>

<llo_original>
// kernel: tpu_custom_call.1
$region0: #{tpu_custom_call.1}
  #allocation0 [shape = 'u32[]', space=smem, size = 0x4, offset = 0x4, fixed_abs, tag = 'smem constant byte address 0x4 - core index']
  #allocation1 [shape = 'u32[72,128]{1,0:T(1,128)}', space=vmem, size = 0x9000, scoped, tag = 'internal scratch']
  %s0 = inlined_call_operand.vmem [shape: f32[100,32], index: 0, kind: input, shape index: {}]
  %s1 = inlined_call_operand.vmem [shape: f32[32,128], index: 1, kind: input, shape index: {}]
  %s2 = inlined_call_operand.vmem [shape: f32[8,128], index: 2, kind: input, shape index: {}]
  %s3 = inlined_call_operand.hbm [shape: f32[100,128], index: 3, kind: output, shape index: {}]
  %s4 = sld [smem:[#allocation0]]
  $region22: #{tpu_custom_call.1} parent=0
    _
  %s6 = ssub.s32 1, %s4
  %s7 = scalar_select 0, %s6, %s4
  $region1: #{tpu_custom_call.1} parent=0
    #allocation2 [shape = 'u8[53248]{0}', space=vmem, size = 0xd000, scoped, tag = 'output window, operand 0, single buffered']
    #allocation3 [shape = 's32[1]{0}', space=sflag, size = 0x4, scoped, tag = 'scoped memory for tpu_custom_call.1']
    %8 = vsyncpa [#allocation3], 0
    // Predicated region
    $region2: #{tpu_custom_call.1} parent=1 // pred_check
      _
    $region3: #{tpu_custom_call.1} parent=1 // pred_check_branch
      %10 = sbr.rel (0) target = $region5
    $region4: #{tpu_custom_call.1} parent=1 // pred_region
      _
    $region5: #{tpu_custom_call.1} parent=1 // pred_fallthru
      _
    // Predicated region
    $region6: #{tpu_custom_call.1} parent=1 // pred_check
      _
    $region7: #{tpu_custom_call.1} parent=1 // pred_check_branch
      %12 = sbr.rel (0) target = $region9
    $region8: #{tpu_custom_call.1} parent=1 // pred_region
      _
    $region9: #{tpu_custom_call.1} parent=1 // pred_fallthru
      _
    // Predicated region
    $region10: #{tpu_custom_call.1} parent=1 // pred_check
      _
    $region11: #{tpu_custom_call.1} parent=1 // pred_check_branch
      %14 = sbr.rel (0) target = $region13
    $region12: #{tpu_custom_call.1} parent=1 // pred_region
      _
    $region13: #{tpu_custom_call.1} parent=1 // pred_fallthru
      _
    %v15 = vld [vmem:[%s0] sm:$0xff]
    %v16 = vld [vmem:[%s0 + $0x8] sm:$0xff]
    %v17 = vld [vmem:[%s0 + $0x10] sm:$0xff]
    %v18 = vld [vmem:[%s0 + $0x18] sm:$0xff]
    %v19 = vld [vmem:[%s0 + $0x20] sm:$0xff]
    %v20 = vld [vmem:[%s0 + $0x28] sm:$0xff]
    %v21 = vld [vmem:[%s0 + $0x30] sm:$0xff]
    %v22 = vld [vmem:[%s0 + $0x38] sm:$0xff]
    %v23 = vld [vmem:[%s0 + $0x40] sm:$0xff]
    %v24 = vld [vmem:[%s0 + $0x48] sm:$0xff]
    %v25 = vld [vmem:[%s0 + $0x50] sm:$0xff]
    %v26 = vld [vmem:[%s0 + $0x58] sm:$0xff]
    %v27 = vld [vmem:[%s0 + $0x60] sm:$0xff]
    %v28 = vld [vmem:[%s1] sm:$0xff]
    %v29 = vld [vmem:[%s1 + $0x8] sm:$0xff]
    %v30 = vld [vmem:[%s1 + $0x10] sm:$0xff]
    %v31 = vld [vmem:[%s1 + $0x18] sm:$0xff]
    %v32 = vld [vmem:[%s2] sm:$0x1]
    %v33 = vperm.slane %v32, 0
    %vm34 = vcmask 261120
    %v36 = vsel %vm34, %v15, 0
    %v39 = vsel %vm34, %v16, 0
    %v42 = vsel %vm34, %v17, 0
    %v45 = vsel %vm34, %v18, 0
    %v48 = vsel %vm34, %v19, 0
    %v51 = vsel %vm34, %v20, 0
    %v54 = vsel %vm34, %v21, 0
    %v57 = vsel %vm34, %v22, 0
    %v60 = vsel %vm34, %v23, 0
    %v63 = vsel %vm34, %v24, 0
    %v66 = vsel %vm34, %v25, 0
    %v69 = vsel %vm34, %v26, 0
    %v72 = vsel %vm34, %v27, 0
    %74 = vmatpush.msra.mxu0 0.0
    %75 = vmatpush.msra.mxu0 0.0
    %76 = vmatpush.msra.mxu0 0.0
    %77 = vmatpush.msra.mxu0 0.0
    %78 = vmatpush.msra.mxu0 0.0
    %79 = vmatpush.msra.mxu0 0.0
    %80 = vmatpush.msra.mxu0 0.0
    %81 = vmatpush.msra.mxu0 0.0
    %82 = vmatpush.msra.mxu0 0.0
    %83 = vmatpush.msra.mxu0 0.0
    %84 = vmatpush.msra.mxu0 0.0
    %85 = vmatpush.msra.mxu0 0.0
    %v86 = vand.u32 %v31, 4294901760
    %87 = vmatpush.msra.mxu0 %v86
    %v88 = vand.u32 %v30, 4294901760
    %89 = vmatpush.msra.mxu0 %v88
    %v90 = vand.u32 %v29, 4294901760
    %91 = vmatpush.msra.mxu0 %v90
    %v92 = vand.u32 %v28, 4294901760
    %93 = vmatpush.msra.mxu0 %v92
    %v94 = vand.u32 %v36, 4294901760
    %v95 = vsub.f32 %v36, %v94
    %v96 = vand.u32 %v95, 4294901760
    %v97 = vsub.f32 %v95, %v96
    %v98 = vand.u32 %v97, 4294901760
    %99 = vmatmul.f32.gmra.mxu0 %v98
    %v100 = vpop.f32.mrf.mxu0
    %v101 = vadd.f32 %v33, %v100
    %v102 = vand.u32 %v39, 4294901760
    %v103 = vsub.f32 %v39, %v102
    %v104 = vand.u32 %v103, 4294901760
    %v105 = vsub.f32 %v103, %v104
    %v106 = vand.u32 %v105, 4294901760
    %107 = vmatmul.f32.gmra.mxu0 %v106
    %v108 = vpop.f32.mrf.mxu0
    %v109 = vadd.f32 %v33, %v108
    %v110 = vand.u32 %v42, 4294901760
    %v111 = vsub.f32 %v42, %v110
    %v112 = vand.u32 %v111, 4294901760
    %v113 = vsub.f32 %v111, %v112
    %v114 = vand.u32 %v113, 4294901760
    %115 = vmatmul.f32.gmra.mxu0 %v114
    %v116 = vpop.f32.mrf.mxu0
    %v117 = vadd.f32 %v33, %v116
    %v118 = vand.u32 %v45, 4294901760
    %v119 = vsub.f32 %v45, %v118
    %v120 = vand.u32 %v119, 4294901760
    %v121 = vsub.f32 %v119, %v120
    %v122 = vand.u32 %v121, 4294901760
    %123 = vmatmul.f32.gmra.mxu0 %v122
    %v124 = vpop.f32.mrf.mxu0
    %v125 = vadd.f32 %v33, %v124
    %v126 = vand.u32 %v48, 4294901760
    %v127 = vsub.f32 %v48, %v126
    %v128 = vand.u32 %v127, 4294901760
    %v129 = vsub.f32 %v127, %v128
    %v130 = vand.u32 %v129, 4294901760
    %131 = vmatmul.f32.gmra.mxu0 %v130
    %v132 = vpop.f32.mrf.mxu0
    %v133 = vadd.f32 %v33, %v132
    %v134 = vand.u32 %v51, 4294901760
    %v135 = vsub.f32 %v51, %v134
    %v136 = vand.u32 %v135, 4294901760
    %v137 = vsub.f32 %v135, %v136
    %v138 = vand.u32 %v137, 4294901760
    %139 = vmatmul.f32.gmra.mxu0 %v138
    %v140 = vpop.f32.mrf.mxu0
    %v141 = vadd.f32 %v33, %v140
    %v142 = vand.u32 %v54, 4294901760
    %v143 = vsub.f32 %v54, %v142
    %v144 = vand.u32 %v143, 4294901760
    %v145 = vsub.f32 %v143, %v144
    %v146 = vand.u32 %v145, 4294901760
    %147 = vmatmul.f32.gmra.mxu0 %v146
    %v148 = vpop.f32.mrf.mxu0
    %v149 = vadd.f32 %v33, %v148
    %v150 = vand.u32 %v57, 4294901760
    %v151 = vsub.f32 %v57, %v150
    %v152 = vand.u32 %v151, 4294901760
    %v153 = vsub.f32 %v151, %v152
    %v154 = vand.u32 %v153, 4294901760
    %155 = vmatmul.f32.gmra.mxu0 %v154
    %v156 = vpop.f32.mrf.mxu0
    %v157 = vadd.f32 %v33, %v156
    %v158 = vand.u32 %v60, 4294901760
    %v159 = vsub.f32 %v60, %v158
    %v160 = vand.u32 %v159, 4294901760
    %v161 = vsub.f32 %v159, %v160
    %v162 = vand.u32 %v161, 4294901760
    %163 = vmatmul.f32.gmra.mxu0 %v162
    %v164 = vpop.f32.mrf.mxu0
    %v165 = vadd.f32 %v33, %v164
    %v166 = vand.u32 %v63, 4294901760
    %v167 = vsub.f32 %v63, %v166
    %v168 = vand.u32 %v167, 4294901760
    %v169 = vsub.f32 %v167, %v168
    %v170 = vand.u32 %v169, 4294901760
    %171 = vmatmul.f32.gmra.mxu0 %v170
    %v172 = vpop.f32.mrf.mxu0
    %v173 = vadd.f32 %v33, %v172
    %v174 = vand.u32 %v66, 4294901760
    %v175 = vsub.f32 %v66, %v174
    %v176 = vand.u32 %v175, 4294901760
    %v177 = vsub.f32 %v175, %v176
    %v178 = vand.u32 %v177, 4294901760
    %179 = vmatmul.f32.gmra.mxu0 %v178
    %v180 = vpop.f32.mrf.mxu0
    %v181 = vadd.f32 %v33, %v180
    %v182 = vand.u32 %v69, 4294901760
    %v183 = vsub.f32 %v69, %v182
    %v184 = vand.u32 %v183, 4294901760
    %v185 = vsub.f32 %v183, %v184
    %v186 = vand.u32 %v185, 4294901760
    %187 = vmatmul.f32.gmra.mxu0 %v186
    %v188 = vpop.f32.mrf.mxu0
    %v189 = vadd.f32 %v33, %v188
    %v190 = vand.u32 %v72, 4294901760
    %v191 = vsub.f32 %v72, %v190
    %v192 = vand.u32 %v191, 4294901760
    %v193 = vsub.f32 %v191, %v192
    %v194 = vand.u32 %v193, 4294901760
    %195 = vmatmul.f32.gmra.mxu0 %v194
    %v196 = vpop.f32.mrf.mxu0
    %v197 = vadd.f32 %v33, %v196
    %198 = vdwg.mxu0
    %199 = vmatpush.msra.mxu0 0.0
    %200 = vmatpush.msra.mxu0 0.0
    %201 = vmatpush.msra.mxu0 0.0
    %202 = vmatpush.msra.mxu0 0.0
    %203 = vmatpush.msra.mxu0 0.0
    %204 = vmatpush.msra.mxu0 0.0
    %205 = vmatpush.msra.mxu0 0.0
    %206 = vmatpush.msra.mxu0 0.0
    %207 = vmatpush.msra.mxu0 0.0
    %208 = vmatpush.msra.mxu0 0.0
    %209 = vmatpush.msra.mxu0 0.0
    %210 = vmatpush.msra.mxu0 0.0
    %v211 = vand.u32 %v31, 4294901760
    %v212 = vsub.f32 %v31, %v211
    %v213 = vand.u32 %v212, 4294901760
    %v214 = vsub.f32 %v212, %v213
    %v215 = vand.u32 %v214, 4294901760
    %216 = vmatpush.msra.mxu0 %v215
    %v217 = vand.u32 %v30, 4294901760
    %v218 = vsub.f32 %v30, %v217
    %v219 = vand.u32 %v218, 4294901760
    %v220 = vsub.f32 %v218, %v219
    %v221 = vand.u32 %v220, 4294901760
    %222 = vmatpush.msra.mxu0 %v221
    %v223 = vand.u32 %v29, 4294901760
    %v224 = vsub.f32 %v29, %v223
    %v225 = vand.u32 %v224, 4294901760
    %v226 = vsub.f32 %v224, %v225
    %v227 = vand.u32 %v226, 4294901760
    %228 = vmatpush.msra.mxu0 %v227
    %v229 = vand.u32 %v28, 4294901760
    %v230 = vsub.f32 %v28, %v229
    %v231 = vand.u32 %v230, 4294901760
    %v232 = vsub.f32 %v230, %v231
    %v233 = vand.u32 %v232, 4294901760
    %234 = vmatpush.msra.mxu0 %v233
    %v235 = vand.u32 %v36, 4294901760
    %236 = vmatmul.f32.gmra.mxu0 %v235
    %v237 = vpop.f32.mrf.mxu0
    %v238 = vadd.f32 %v101, %v237
    %v239 = vand.u32 %v39, 4294901760
    %240 = vmatmul.f32.gmra.mxu0 %v239
    %v241 = vpop.f32.mrf.mxu0
    %v242 = vadd.f32 %v109, %v241
    %v243 = vand.u32 %v42, 4294901760
    %244 = vmatmul.f32.gmra.mxu0 %v243
    %v245 = vpop.f32.mrf.mxu0
    %v246 = vadd.f32 %v117, %v245
    %v247 = vand.u32 %v45, 4294901760
    %248 = vmatmul.f32.gmra.mxu0 %v247
    %v249 = vpop.f32.mrf.mxu0
    %v250 = vadd.f32 %v125, %v249
    %v251 = vand.u32 %v48, 4294901760
    %252 = vmatmul.f32.gmra.mxu0 %v251
    %v253 = vpop.f32.mrf.mxu0
    %v254 = vadd.f32 %v133, %v253
    %v255 = vand.u32 %v51, 4294901760
    %256 = vmatmul.f32.gmra.mxu0 %v255
    %v257 = vpop.f32.mrf.mxu0
    %v258 = vadd.f32 %v141, %v257
    %v259 = vand.u32 %v54, 4294901760
    %260 = vmatmul.f32.gmra.mxu0 %v259
    %v261 = vpop.f32.mrf.mxu0
    %v262 = vadd.f32 %v149, %v261
    %v263 = vand.u32 %v57, 4294901760
    %264 = vmatmul.f32.gmra.mxu0 %v263
    %v265 = vpop.f32.mrf.mxu0
    %v266 = vadd.f32 %v157, %v265
    %v267 = vand.u32 %v60, 4294901760
    %268 = vmatmul.f32.gmra.mxu0 %v267
    %v269 = vpop.f32.mrf.mxu0
    %v270 = vadd.f32 %v165, %v269
    %v271 = vand.u32 %v63, 4294901760
    %272 = vmatmul.f32.gmra.mxu0 %v271
    %v273 = vpop.f32.mrf.mxu0
    %v274 = vadd.f32 %v173, %v273
    %v275 = vand.u32 %v66, 4294901760
    %276 = vmatmul.f32.gmra.mxu0 %v275
    %v277 = vpop.f32.mrf.mxu0
    %v278 = vadd.f32 %v181, %v277
    %v279 = vand.u32 %v69, 4294901760
    %280 = vmatmul.f32.gmra.mxu0 %v279
    %v281 = vpop.f32.mrf.mxu0
    %v282 = vadd.f32 %v189, %v281
    %v283 = vand.u32 %v72, 4294901760
    %284 = vmatmul.f32.gmra.mxu0 %v283
    %v285 = vpop.f32.mrf.mxu0
    %v286 = vadd.f32 %v197, %v285
    %287 = vdwg.mxu0
    %288 = vmatpush.msra.mxu0 0.0
    %289 = vmatpush.msra.mxu0 0.0
    %290 = vmatpush.msra.mxu0 0.0
    %291 = vmatpush.msra.mxu0 0.0
    %292 = vmatpush.msra.mxu0 0.0
    %293 = vmatpush.msra.mxu0 0.0
    %294 = vmatpush.msra.mxu0 0.0
    %295 = vmatpush.msra.mxu0 0.0
    %296 = vmatpush.msra.mxu0 0.0
    %297 = vmatpush.msra.mxu0 0.0
    %298 = vmatpush.msra.mxu0 0.0
    %299 = vmatpush.msra.mxu0 0.0
    %v300 = vand.u32 %v31, 4294901760
    %v301 = vsub.f32 %v31, %v300
    %302 = vmatpush.msra.mxu0 %v301
    %v303 = vand.u32 %v30, 4294901760
    %v304 = vsub.f32 %v30, %v303
    %305 = vmatpush.msra.mxu0 %v304
    %v306 = vand.u32 %v29, 4294901760
    %v307 = vsub.f32 %v29, %v306
    %308 = vmatpush.msra.mxu0 %v307
    %v309 = vand.u32 %v28, 4294901760
    %v310 = vsub.f32 %v28, %v309
    %311 = vmatpush.msra.mxu0 %v310
    %v312 = vand.u32 %v36, 4294901760
    %v313 = vsub.f32 %v36, %v312
    %314 = vmatmul.f32.gmra.mxu0 %v313
    %v315 = vpop.f32.mrf.mxu0
    %v316 = vadd.f32 %v238, %v315
    %v317 = vand.u32 %v39, 4294901760
    %v318 = vsub.f32 %v39, %v317
    %319 = vmatmul.f32.gmra.mxu0 %v318
    %v320 = vpop.f32.mrf.mxu0
    %v321 = vadd.f32 %v242, %v320
    %v322 = vand.u32 %v42, 4294901760
    %v323 = vsub.f32 %v42, %v322
    %324 = vmatmul.f32.gmra.mxu0 %v323
    %v325 = vpop.f32.mrf.mxu0
    %v326 = vadd.f32 %v246, %v325
    %v327 = vand.u32 %v45, 4294901760
    %v328 = vsub.f32 %v45, %v327
    %329 = vmatmul.f32.gmra.mxu0 %v328
    %v330 = vpop.f32.mrf.mxu0
    %v331 = vadd.f32 %v250, %v330
    %v332 = vand.u32 %v48, 4294901760
    %v333 = vsub.f32 %v48, %v332
    %334 = vmatmul.f32.gmra.mxu0 %v333
    %v335 = vpop.f32.mrf.mxu0
    %v336 = vadd.f32 %v254, %v335
    %v337 = vand.u32 %v51, 4294901760
    %v338 = vsub.f32 %v51, %v337
    %339 = vmatmul.f32.gmra.mxu0 %v338
    %v340 = vpop.f32.mrf.mxu0
    %v341 = vadd.f32 %v258, %v340
    %v342 = vand.u32 %v54, 4294901760
    %v343 = vsub.f32 %v54, %v342
    %344 = vmatmul.f32.gmra.mxu0 %v343
    %v345 = vpop.f32.mrf.mxu0
    %v346 = vadd.f32 %v262, %v345
    %v347 = vand.u32 %v57, 4294901760
    %v348 = vsub.f32 %v57, %v347
    %349 = vmatmul.f32.gmra.mxu0 %v348
    %v350 = vpop.f32.mrf.mxu0
    %v351 = vadd.f32 %v266, %v350
    %v352 = vand.u32 %v60, 4294901760
    %v353 = vsub.f32 %v60, %v352
    %354 = vmatmul.f32.gmra.mxu0 %v353
    %v355 = vpop.f32.mrf.mxu0
    %v356 = vadd.f32 %v270, %v355
    %v357 = vand.u32 %v63, 4294901760
    %v358 = vsub.f32 %v63, %v357
    %359 = vmatmul.f32.gmra.mxu0 %v358
    %v360 = vpop.f32.mrf.mxu0
    %v361 = vadd.f32 %v274, %v360
    %v362 = vand.u32 %v66, 4294901760
    %v363 = vsub.f32 %v66, %v362
    %364 = vmatmul.f32.gmra.mxu0 %v363
    %v365 = vpop.f32.mrf.mxu0
    %v366 = vadd.f32 %v278, %v365
    %v367 = vand.u32 %v69, 4294901760
    %v368 = vsub.f32 %v69, %v367
    %369 = vmatmul.f32.gmra.mxu0 %v368
    %v370 = vpop.f32.mrf.mxu0
    %v371 = vadd.f32 %v282, %v370
    %v372 = vand.u32 %v72, 4294901760
    %v373 = vsub.f32 %v72, %v372
    %374 = vmatmul.f32.gmra.mxu0 %v373
    %v375 = vpop.f32.mrf.mxu0
    %v376 = vadd.f32 %v286, %v375
    %377 = vdwg.mxu0
    %378 = vmatpush.msra.mxu0 0.0
    %379 = vmatpush.msra.mxu0 0.0
    %380 = vmatpush.msra.mxu0 0.0
    %381 = vmatpush.msra.mxu0 0.0
    %382 = vmatpush.msra.mxu0 0.0
    %383 = vmatpush.msra.mxu0 0.0
    %384 = vmatpush.msra.mxu0 0.0
    %385 = vmatpush.msra.mxu0 0.0
    %386 = vmatpush.msra.mxu0 0.0
    %387 = vmatpush.msra.mxu0 0.0
    %388 = vmatpush.msra.mxu0 0.0
    %389 = vmatpush.msra.mxu0 0.0
    %v390 = vand.u32 %v31, 4294901760
    %391 = vmatpush.msra.mxu0 %v390
    %v392 = vand.u32 %v30, 4294901760
    %393 = vmatpush.msra.mxu0 %v392
    %v394 = vand.u32 %v29, 4294901760
    %395 = vmatpush.msra.mxu0 %v394
    %v396 = vand.u32 %v28, 4294901760
    %397 = vmatpush.msra.mxu0 %v396
    %v398 = vand.u32 %v36, 4294901760
    %v399 = vsub.f32 %v36, %v398
    %v400 = vand.u32 %v399, 4294901760
    %401 = vmatmul.f32.gmra.mxu0 %v400
    %v402 = vpop.f32.mrf.mxu0
    %v403 = vadd.f32 %v316, %v402
    %v404 = vand.u32 %v39, 4294901760
    %v405 = vsub.f32 %v39, %v404
    %v406 = vand.u32 %v405, 4294901760
    %407 = vmatmul.f32.gmra.mxu0 %v406
    %v408 = vpop.f32.mrf.mxu0
    %v409 = vadd.f32 %v321, %v408
    %v410 = vand.u32 %v42, 4294901760
    %v411 = vsub.f32 %v42, %v410
    %v412 = vand.u32 %v411, 4294901760
    %413 = vmatmul.f32.gmra.mxu0 %v412
    %v414 = vpop.f32.mrf.mxu0
    %v415 = vadd.f32 %v326, %v414
    %v416 = vand.u32 %v45, 4294901760
    %v417 = vsub.f32 %v45, %v416
    %v418 = vand.u32 %v417, 4294901760
    %419 = vmatmul.f32.gmra.mxu0 %v418
    %v420 = vpop.f32.mrf.mxu0
    %v421 = vadd.f32 %v331, %v420
    %v422 = vand.u32 %v48, 4294901760
    %v423 = vsub.f32 %v48, %v422
    %v424 = vand.u32 %v423, 4294901760
    %425 = vmatmul.f32.gmra.mxu0 %v424
    %v426 = vpop.f32.mrf.mxu0
    %v427 = vadd.f32 %v336, %v426
    %v428 = vand.u32 %v51, 4294901760
    %v429 = vsub.f32 %v51, %v428
    %v430 = vand.u32 %v429, 4294901760
    %431 = vmatmul.f32.gmra.mxu0 %v430
    %v432 = vpop.f32.mrf.mxu0
    %v433 = vadd.f32 %v341, %v432
    %v434 = vand.u32 %v54, 4294901760
    %v435 = vsub.f32 %v54, %v434
    %v436 = vand.u32 %v435, 4294901760
    %437 = vmatmul.f32.gmra.mxu0 %v436
    %v438 = vpop.f32.mrf.mxu0
    %v439 = vadd.f32 %v346, %v438
    %v440 = vand.u32 %v57, 4294901760
    %v441 = vsub.f32 %v57, %v440
    %v442 = vand.u32 %v441, 4294901760
    %443 = vmatmul.f32.gmra.mxu0 %v442
    %v444 = vpop.f32.mrf.mxu0
    %v445 = vadd.f32 %v351, %v444
    %v446 = vand.u32 %v60, 4294901760
    %v447 = vsub.f32 %v60, %v446
    %v448 = vand.u32 %v447, 4294901760
    %449 = vmatmul.f32.gmra.mxu0 %v448
    %v450 = vpop.f32.mrf.mxu0
    %v451 = vadd.f32 %v356, %v450
    %v452 = vand.u32 %v63, 4294901760
    %v453 = vsub.f32 %v63, %v452
    %v454 = vand.u32 %v453, 4294901760
    %455 = vmatmul.f32.gmra.mxu0 %v454
    %v456 = vpop.f32.mrf.mxu0
    %v457 = vadd.f32 %v361, %v456
    %v458 = vand.u32 %v66, 4294901760
    %v459 = vsub.f32 %v66, %v458
    %v460 = vand.u32 %v459, 4294901760
    %461 = vmatmul.f32.gmra.mxu0 %v460
    %v462 = vpop.f32.mrf.mxu0
    %v463 = vadd.f32 %v366, %v462
    %v464 = vand.u32 %v69, 4294901760
    %v465 = vsub.f32 %v69, %v464
    %v466 = vand.u32 %v465, 4294901760
    %467 = vmatmul.f32.gmra.mxu0 %v466
    %v468 = vpop.f32.mrf.mxu0
    %v469 = vadd.f32 %v371, %v468
    %v470 = vand.u32 %v72, 4294901760
    %v471 = vsub.f32 %v72, %v470
    %v472 = vand.u32 %v471, 4294901760
    %473 = vmatmul.f32.gmra.mxu0 %v472
    %v474 = vpop.f32.mrf.mxu0
    %v475 = vadd.f32 %v376, %v474
    %476 = vdwg.mxu0
    %477 = vmatpush.msra.mxu0 0.0
    %478 = vmatpush.msra.mxu0 0.0
    %479 = vmatpush.msra.mxu0 0.0
    %480 = vmatpush.msra.mxu0 0.0
    %481 = vmatpush.msra.mxu0 0.0
    %482 = vmatpush.msra.mxu0 0.0
    %483 = vmatpush.msra.mxu0 0.0
    %484 = vmatpush.msra.mxu0 0.0
    %485 = vmatpush.msra.mxu0 0.0
    %486 = vmatpush.msra.mxu0 0.0
    %487 = vmatpush.msra.mxu0 0.0
    %488 = vmatpush.msra.mxu0 0.0
    %v489 = vand.u32 %v31, 4294901760
    %v490 = vsub.f32 %v31, %v489
    %v491 = vand.u32 %v490, 4294901760
    %492 = vmatpush.msra.mxu0 %v491
    %v493 = vand.u32 %v30, 4294901760
    %v494 = vsub.f32 %v30, %v493
    %v495 = vand.u32 %v494, 4294901760
    %496 = vmatpush.msra.mxu0 %v495
    %v497 = vand.u32 %v29, 4294901760
    %v498 = vsub.f32 %v29, %v497
    %v499 = vand.u32 %v498, 4294901760
    %500 = vmatpush.msra.mxu0 %v499
    %v501 = vand.u32 %v28, 4294901760
    %v502 = vsub.f32 %v28, %v501
    %v503 = vand.u32 %v502, 4294901760
    %504 = vmatpush.msra.mxu0 %v503
    %v505 = vand.u32 %v36, 4294901760
    %506 = vmatmul.f32.gmra.mxu0 %v505
    %v507 = vpop.f32.mrf.mxu0
    %v508 = vadd.f32 %v403, %v507
    %v509 = vand.u32 %v39, 4294901760
    %510 = vmatmul.f32.gmra.mxu0 %v509
    %v511 = vpop.f32.mrf.mxu0
    %v512 = vadd.f32 %v409, %v511
    %v513 = vand.u32 %v42, 4294901760
    %514 = vmatmul.f32.gmra.mxu0 %v513
    %v515 = vpop.f32.mrf.mxu0
    %v516 = vadd.f32 %v415, %v515
    %v517 = vand.u32 %v45, 4294901760
    %518 = vmatmul.f32.gmra.mxu0 %v517
    %v519 = vpop.f32.mrf.mxu0
    %v520 = vadd.f32 %v421, %v519
    %v521 = vand.u32 %v48, 4294901760
    %522 = vmatmul.f32.gmra.mxu0 %v521
    %v523 = vpop.f32.mrf.mxu0
    %v524 = vadd.f32 %v427, %v523
    %v525 = vand.u32 %v51, 4294901760
    %526 = vmatmul.f32.gmra.mxu0 %v525
    %v527 = vpop.f32.mrf.mxu0
    %v528 = vadd.f32 %v433, %v527
    %v529 = vand.u32 %v54, 4294901760
    %530 = vmatmul.f32.gmra.mxu0 %v529
    %v531 = vpop.f32.mrf.mxu0
    %v532 = vadd.f32 %v439, %v531
    %v533 = vand.u32 %v57, 4294901760
    %534 = vmatmul.f32.gmra.mxu0 %v533
    %v535 = vpop.f32.mrf.mxu0
    %v536 = vadd.f32 %v445, %v535
    %v537 = vand.u32 %v60, 4294901760
    %538 = vmatmul.f32.gmra.mxu0 %v537
    %v539 = vpop.f32.mrf.mxu0
    %v540 = vadd.f32 %v451, %v539
    %v541 = vand.u32 %v63, 4294901760
    %542 = vmatmul.f32.gmra.mxu0 %v541
    %v543 = vpop.f32.mrf.mxu0
    %v544 = vadd.f32 %v457, %v543
    %v545 = vand.u32 %v66, 4294901760
    %546 = vmatmul.f32.gmra.mxu0 %v545
    %v547 = vpop.f32.mrf.mxu0
    %v548 = vadd.f32 %v463, %v547
    %v549 = vand.u32 %v69, 4294901760
    %550 = vmatmul.f32.gmra.mxu0 %v549
    %v551 = vpop.f32.mrf.mxu0
    %v552 = vadd.f32 %v469, %v551
    %v553 = vand.u32 %v72, 4294901760
    %554 = vmatmul.f32.gmra.mxu0 %v553
    %v555 = vpop.f32.mrf.mxu0
    %v556 = vadd.f32 %v475, %v555
    %557 = vdwg.mxu0
    %558 = vmatpush.msra.mxu0 0.0
    %559 = vmatpush.msra.mxu0 0.0
    %560 = vmatpush.msra.mxu0 0.0
    %561 = vmatpush.msra.mxu0 0.0
    %562 = vmatpush.msra.mxu0 0.0
    %563 = vmatpush.msra.mxu0 0.0
    %564 = vmatpush.msra.mxu0 0.0
    %565 = vmatpush.msra.mxu0 0.0
    %566 = vmatpush.msra.mxu0 0.0
    %567 = vmatpush.msra.mxu0 0.0
    %568 = vmatpush.msra.mxu0 0.0
    %569 = vmatpush.msra.mxu0 0.0
    %v570 = vand.u32 %v31, 4294901760
    %571 = vmatpush.msra.mxu0 %v570
    %v572 = vand.u32 %v30, 4294901760
    %573 = vmatpush.msra.mxu0 %v572
    %v574 = vand.u32 %v29, 4294901760
    %575 = vmatpush.msra.mxu0 %v574
    %v576 = vand.u32 %v28, 4294901760
    %577 = vmatpush.msra.mxu0 %v576
    %v578 = vand.u32 %v36, 4294901760
    %579 = vmatmul.f32.gmra.mxu0 %v578
    %v580 = vpop.f32.mrf.mxu0
    %v581 = vadd.f32 %v508, %v580
    %v582 = vand.u32 %v39, 4294901760
    %583 = vmatmul.f32.gmra.mxu0 %v582
    %v584 = vpop.f32.mrf.mxu0
    %v585 = vadd.f32 %v512, %v584
    %v586 = vand.u32 %v42, 4294901760
    %587 = vmatmul.f32.gmra.mxu0 %v586
    %v588 = vpop.f32.mrf.mxu0
    %v589 = vadd.f32 %v516, %v588
    %v590 = vand.u32 %v45, 4294901760
    %591 = vmatmul.f32.gmra.mxu0 %v590
    %v592 = vpop.f32.mrf.mxu0
    %v593 = vadd.f32 %v520, %v592
    %v594 = vand.u32 %v48, 4294901760
    %595 = vmatmul.f32.gmra.mxu0 %v594
    %v596 = vpop.f32.mrf.mxu0
    %v597 = vadd.f32 %v524, %v596
    %v598 = vand.u32 %v51, 4294901760
    %599 = vmatmul.f32.gmra.mxu0 %v598
    %v600 = vpop.f32.mrf.mxu0
    %v601 = vadd.f32 %v528, %v600
    %v602 = vand.u32 %v54, 4294901760
    %603 = vmatmul.f32.gmra.mxu0 %v602
    %v604 = vpop.f32.mrf.mxu0
    %v605 = vadd.f32 %v532, %v604
    %v606 = vand.u32 %v57, 4294901760
    %607 = vmatmul.f32.gmra.mxu0 %v606
    %v608 = vpop.f32.mrf.mxu0
    %v609 = vadd.f32 %v536, %v608
    %v610 = vand.u32 %v60, 4294901760
    %611 = vmatmul.f32.gmra.mxu0 %v610
    %v612 = vpop.f32.mrf.mxu0
    %v613 = vadd.f32 %v540, %v612
    %v614 = vand.u32 %v63, 4294901760
    %615 = vmatmul.f32.gmra.mxu0 %v614
    %v616 = vpop.f32.mrf.mxu0
    %v617 = vadd.f32 %v544, %v616
    %v618 = vand.u32 %v66, 4294901760
    %619 = vmatmul.f32.gmra.mxu0 %v618
    %v620 = vpop.f32.mrf.mxu0
    %v621 = vadd.f32 %v548, %v620
    %v622 = vand.u32 %v69, 4294901760
    %623 = vmatmul.f32.gmra.mxu0 %v622
    %v624 = vpop.f32.mrf.mxu0
    %v625 = vadd.f32 %v552, %v624
    %v626 = vand.u32 %v72, 4294901760
    %627 = vmatmul.f32.gmra.mxu0 %v626
    %v628 = vpop.f32.mrf.mxu0
    %v629 = vadd.f32 %v556, %v628
    %630 = vdwg.mxu0
    %631 = vadd.xlane.f32.xlu0 %v581
    %v632 = vpop.xlane.xlu0 %631
    %633 = vadd.xlane.f32.xlu0 %v585
    %v634 = vpop.xlane.xlu0 %633
    %635 = vadd.xlane.f32.xlu0 %v589
    %v636 = vpop.xlane.xlu0 %635
    %637 = vadd.xlane.f32.xlu0 %v593
    %v638 = vpop.xlane.xlu0 %637
    %639 = vadd.xlane.f32.xlu0 %v597
    %v640 = vpop.xlane.xlu0 %639
    %641 = vadd.xlane.f32.xlu0 %v601
    %v642 = vpop.xlane.xlu0 %641
    %643 = vadd.xlane.f32.xlu0 %v605
    %v644 = vpop.xlane.xlu0 %643
    %645 = vadd.xlane.f32.xlu0 %v609
    %v646 = vpop.xlane.xlu0 %645
    %647 = vadd.xlane.f32.xlu0 %v613
    %v648 = vpop.xlane.xlu0 %647
    %649 = vadd.xlane.f32.xlu0 %v617
    %v650 = vpop.xlane.xlu0 %649
    %651 = vadd.xlane.f32.xlu0 %v621
    %v652 = vpop.xlane.xlu0 %651
    %653 = vadd.xlane.f32.xlu0 %v625
    %v654 = vpop.xlane.xlu0 %653
    %655 = vadd.xlane.f32.xlu0 %v629
    %v656 = vpop.xlane.xlu0 %655
    %v657 = vmul.f32 %v632, 0.03125
    %v658 = vmul.f32 %v634, 0.03125
    %v659 = vmul.f32 %v636, 0.03125
    %v660 = vmul.f32 %v638, 0.03125
    %v661 = vmul.f32 %v640, 0.03125
    %v662 = vmul.f32 %v642, 0.03125
    %v663 = vmul.f32 %v644, 0.03125
    %v664 = vmul.f32 %v646, 0.03125
    %v665 = vmul.f32 %v648, 0.03125
    %v666 = vmul.f32 %v650, 0.03125
    %v667 = vmul.f32 %v652, 0.03125
    %v668 = vmul.f32 %v654, 0.03125
    %v669 = vmul.f32 %v656, 0.03125
    %v670 = vmul.f32 %v581, %v581
    %v671 = vmul.f32 %v585, %v585
    %v672 = vmul.f32 %v589, %v589
    %v673 = vmul.f32 %v593, %v593
    %v674 = vmul.f32 %v597, %v597
    %v675 = vmul.f32 %v601, %v601
    %v676 = vmul.f32 %v605, %v605
    %v677 = vmul.f32 %v609, %v609
    %v678 = vmul.f32 %v613, %v613
    %v679 = vmul.f32 %v617, %v617
    %v680 = vmul.f32 %v621, %v621
    %v681 = vmul.f32 %v625, %v625
    %v682 = vmul.f32 %v629, %v629
    %683 = vadd.xlane.f32.xlu0 %v670
    %v684 = vpop.xlane.xlu0 %683
    %685 = vadd.xlane.f32.xlu0 %v671
    %v686 = vpop.xlane.xlu0 %685
    %687 = vadd.xlane.f32.xlu0 %v672
    %v688 = vpop.xlane.xlu0 %687
    %689 = vadd.xlane.f32.xlu0 %v673
    %v690 = vpop.xlane.xlu0 %689
    %691 = vadd.xlane.f32.xlu0 %v674
    %v692 = vpop.xlane.xlu0 %691
    %693 = vadd.xlane.f32.xlu0 %v675
    %v694 = vpop.xlane.xlu0 %693
    %695 = vadd.xlane.f32.xlu0 %v676
    %v696 = vpop.xlane.xlu0 %695
    %697 = vadd.xlane.f32.xlu0 %v677
    %v698 = vpop.xlane.xlu0 %697
    %699 = vadd.xlane.f32.xlu0 %v678
    %v700 = vpop.xlane.xlu0 %699
    %701 = vadd.xlane.f32.xlu0 %v679
    %v702 = vpop.xlane.xlu0 %701
    %703 = vadd.xlane.f32.xlu0 %v680
    %v704 = vpop.xlane.xlu0 %703
    %705 = vadd.xlane.f32.xlu0 %v681
    %v706 = vpop.xlane.xlu0 %705
    %707 = vadd.xlane.f32.xlu0 %v682
    %v708 = vpop.xlane.xlu0 %707
    %v709 = vmul.f32 %v684, 0.03125
    %v710 = vmul.f32 %v686, 0.03125
    %v711 = vmul.f32 %v688, 0.03125
    %v712 = vmul.f32 %v690, 0.03125
    %v713 = vmul.f32 %v692, 0.03125
    %v714 = vmul.f32 %v694, 0.03125
    %v715 = vmul.f32 %v696, 0.03125
    %v716 = vmul.f32 %v698, 0.03125
    %v717 = vmul.f32 %v700, 0.03125
    %v718 = vmul.f32 %v702, 0.03125
    %v719 = vmul.f32 %v704, 0.03125
    %v720 = vmul.f32 %v706, 0.03125
    %v721 = vmul.f32 %v708, 0.03125
    %v722 = vmul.f32 %v657, %v657
    %v723 = vmul.f32 %v658, %v658
    %v724 = vmul.f32 %v659, %v659
    %v725 = vmul.f32 %v660, %v660
    %v726 = vmul.f32 %v661, %v661
    %v727 = vmul.f32 %v662, %v662
    %v728 = vmul.f32 %v663, %v663
    %v729 = vmul.f32 %v664, %v664
    %v730 = vmul.f32 %v665, %v665
    %v731 = vmul.f32 %v666, %v666
    %v732 = vmul.f32 %v667, %v667
    %v733 = vmul.f32 %v668, %v668
    %v734 = vmul.f32 %v669, %v669
    %v735 = vsub.f32 %v709, %v722
    %v736 = vsub.f32 %v710, %v723
    %v737 = vsub.f32 %v711, %v724
    %v738 = vsub.f32 %v712, %v725
    %v739 = vsub.f32 %v713, %v726
    %v740 = vsub.f32 %v714, %v727
    %v741 = vsub.f32 %v715, %v728
    %v742 = vsub.f32 %v716, %v729
    %v743 = vsub.f32 %v717, %v730
    %v744 = vsub.f32 %v718, %v731
    %v745 = vsub.f32 %v719, %v732
    %v746 = vsub.f32 %v720, %v733
    %v747 = vsub.f32 %v721, %v734
    %v748 = vmax.f32 %v735, 0.0
    %v749 = vmax.f32 %v736, 0.0
    %v750 = vmax.f32 %v737, 0.0
    %v751 = vmax.f32 %v738, 0.0
    %v752 = vmax.f32 %v739, 0.0
    %v753 = vmax.f32 %v740, 0.0
    %v754 = vmax.f32 %v741, 0.0
    %v755 = vmax.f32 %v742, 0.0
    %v756 = vmax.f32 %v743, 0.0
    %v757 = vmax.f32 %v744, 0.0
    %v758 = vmax.f32 %v745, 0.0
    %v759 = vmax.f32 %v746, 0.0
    %v760 = vmax.f32 %v747, 0.0
    %v761 = vsub.f32 %v581, %v657
    %v762 = vsub.f32 %v585, %v658
    %v763 = vsub.f32 %v589, %v659
    %v764 = vsub.f32 %v593, %v660
    %v765 = vsub.f32 %v597, %v661
    %v766 = vsub.f32 %v601, %v662
    %v767 = vsub.f32 %v605, %v663
    %v768 = vsub.f32 %v609, %v664
    %v769 = vsub.f32 %v613, %v665
    %v770 = vsub.f32 %v617, %v666
    %v771 = vsub.f32 %v621, %v667
    %v772 = vsub.f32 %v625, %v668
    %v773 = vsub.f32 %v629, %v669
    %v774 = vadd.f32 %v748, 1e-05
    %v775 = vadd.f32 %v749, 1e-05
    %v776 = vadd.f32 %v750, 1e-05
    %v777 = vadd.f32 %v751, 1e-05
    %v778 = vadd.f32 %v752, 1e-05
    %v779 = vadd.f32 %v753, 1e-05
    %v780 = vadd.f32 %v754, 1e-05
    %v781 = vadd.f32 %v755, 1e-05
    %v782 = vadd.f32 %v756, 1e-05
    %v783 = vadd.f32 %v757, 1e-05
    %v784 = vadd.f32 %v758, 1e-05
    %v785 = vadd.f32 %v759, 1e-05
    %v786 = vadd.f32 %v760, 1e-05
    %v787 = vrsqrt.pop %v774
    %v788 = vmul.f32 %v787, %v774
    %v789 = vmul.f32 %v788, %v787
    %v790 = vmul.f32 0.5, %v789
    %v791 = vsub.f32 1.5, %v790
    %v792 = vmul.f32 %v787, %v791
    %vm793 = vweird.f32 %v774
    %vm794 = vweird.f32 %v787
    %vm795 = vmor %vm793, %vm794
    %v796 = vsel %vm795, %v787, %v792
    %v797 = vrsqrt.pop %v775
    %v798 = vmul.f32 %v797, %v775
    %v799 = vmul.f32 %v798, %v797
    %v800 = vmul.f32 0.5, %v799
    %v801 = vsub.f32 1.5, %v800
    %v802 = vmul.f32 %v797, %v801
    %vm803 = vweird.f32 %v775
    %vm804 = vweird.f32 %v797
    %vm805 = vmor %vm803, %vm804
    %v806 = vsel %vm805, %v797, %v802
    %v807 = vrsqrt.pop %v776
    %v808 = vmul.f32 %v807, %v776
    %v809 = vmul.f32 %v808, %v807
    %v810 = vmul.f32 0.5, %v809
    %v811 = vsub.f32 1.5, %v810
    %v812 = vmul.f32 %v807, %v811
    %vm813 = vweird.f32 %v776
    %vm814 = vweird.f32 %v807
    %vm815 = vmor %vm813, %vm814
    %v816 = vsel %vm815, %v807, %v812
    %v817 = vrsqrt.pop %v777
    %v818 = vmul.f32 %v817, %v777
    %v819 = vmul.f32 %v818, %v817
    %v820 = vmul.f32 0.5, %v819
    %v821 = vsub.f32 1.5, %v820
    %v822 = vmul.f32 %v817, %v821
    %vm823 = vweird.f32 %v777
    %vm824 = vweird.f32 %v817
    %vm825 = vmor %vm823, %vm824
    %v826 = vsel %vm825, %v817, %v822
    %v827 = vrsqrt.pop %v778
    %v828 = vmul.f32 %v827, %v778
    %v829 = vmul.f32 %v828, %v827
    %v830 = vmul.f32 0.5, %v829
    %v831 = vsub.f32 1.5, %v830
    %v832 = vmul.f32 %v827, %v831
    %vm833 = vweird.f32 %v778
    %vm834 = vweird.f32 %v827
    %vm835 = vmor %vm833, %vm834
    %v836 = vsel %vm835, %v827, %v832
    %v837 = vrsqrt.pop %v779
    %v838 = vmul.f32 %v837, %v779
    %v839 = vmul.f32 %v838, %v837
    %v840 = vmul.f32 0.5, %v839
    %v841 = vsub.f32 1.5, %v840
    %v842 = vmul.f32 %v837, %v841
    %vm843 = vweird.f32 %v779
    %vm844 = vweird.f32 %v837
    %vm845 = vmor %vm843, %vm844
    %v846 = vsel %vm845, %v837, %v842
    %v847 = vrsqrt.pop %v780
    %v848 = vmul.f32 %v847, %v780
    %v849 = vmul.f32 %v848, %v847
    %v850 = vmul.f32 0.5, %v849
    %v851 = vsub.f32 1.5, %v850
    %v852 = vmul.f32 %v847, %v851
    %vm853 = vweird.f32 %v780
    %vm854 = vweird.f32 %v847
    %vm855 = vmor %vm853, %vm854
    %v856 = vsel %vm855, %v847, %v852
    %v857 = vrsqrt.pop %v781
    %v858 = vmul.f32 %v857, %v781
    %v859 = vmul.f32 %v858, %v857
    %v860 = vmul.f32 0.5, %v859
    %v861 = vsub.f32 1.5, %v860
    %v862 = vmul.f32 %v857, %v861
    %vm863 = vweird.f32 %v781
    %vm864 = vweird.f32 %v857
    %vm865 = vmor %vm863, %vm864
    %v866 = vsel %vm865, %v857, %v862
    %v867 = vrsqrt.pop %v782
    %v868 = vmul.f32 %v867, %v782
    %v869 = vmul.f32 %v868, %v867
    %v870 = vmul.f32 0.5, %v869
    %v871 = vsub.f32 1.5, %v870
    %v872 = vmul.f32 %v867, %v871
    %vm873 = vweird.f32 %v782
    %vm874 = vweird.f32 %v867
    %vm875 = vmor %vm873, %vm874
    %v876 = vsel %vm875, %v867, %v872
    %v877 = vrsqrt.pop %v783
    %v878 = vmul.f32 %v877, %v783
    %v879 = vmul.f32 %v878, %v877
    %v880 = vmul.f32 0.5, %v879
    %v881 = vsub.f32 1.5, %v880
    %v882 = vmul.f32 %v877, %v881
    %vm883 = vweird.f32 %v783
    %vm884 = vweird.f32 %v877
    %vm885 = vmor %vm883, %vm884
    %v886 = vsel %vm885, %v877, %v882
    %v887 = vrsqrt.pop %v784
    %v888 = vmul.f32 %v887, %v784
    %v889 = vmul.f32 %v888, %v887
    %v890 = vmul.f32 0.5, %v889
    %v891 = vsub.f32 1.5, %v890
    %v892 = vmul.f32 %v887, %v891
    %vm893 = vweird.f32 %v784
    %vm894 = vweird.f32 %v887
    %vm895 = vmor %vm893, %vm894
    %v896 = vsel %vm895, %v887, %v892
    %v897 = vrsqrt.pop %v785
    %v898 = vmul.f32 %v897, %v785
    %v899 = vmul.f32 %v898, %v897
    %v900 = vmul.f32 0.5, %v899
    %v901 = vsub.f32 1.5, %v900
    %v902 = vmul.f32 %v897, %v901
    %vm903 = vweird.f32 %v785
    %vm904 = vweird.f32 %v897
    %vm905 = vmor %vm903, %vm904
    %v906 = vsel %vm905, %v897, %v902
    %v907 = vrsqrt.pop %v786
    %v908 = vmul.f32 %v907, %v786
    %v909 = vmul.f32 %v908, %v907
    %v910 = vmul.f32 0.5, %v909
    %v911 = vsub.f32 1.5, %v910
    %v912 = vmul.f32 %v907, %v911
    %vm913 = vweird.f32 %v786
    %vm914 = vweird.f32 %v907
    %vm915 = vmor %vm913, %vm914
    %v916 = vsel %vm915, %v907, %v912
    %v917 = vmul.f32 %v761, %v796
    %v918 = vmul.f32 %v762, %v806
    %v919 = vmul.f32 %v763, %v816
    %v920 = vmul.f32 %v764, %v826
    %v921 = vmul.f32 %v765, %v836
    %v922 = vmul.f32 %v766, %v846
    %v923 = vmul.f32 %v767, %v856
    %v924 = vmul.f32 %v768, %v866
    %v925 = vmul.f32 %v769, %v876
    %v926 = vmul.f32 %v770, %v886
    %v927 = vmul.f32 %v771, %v896
    %v928 = vmul.f32 %v772, %v906
    %v929 = vmul.f32 %v773, %v916
    %v930 = vld [vmem:[%s2 + $0x1] sm:$0x1]
    %v931 = vperm.slane %v930, 0
    %v932 = vmul.f32 %v917, %v931
    %v933 = vmul.f32 %v918, %v931
    %v934 = vmul.f32 %v919, %v931
    %v935 = vmul.f32 %v920, %v931
    %v936 = vmul.f32 %v921, %v931
    %v937 = vmul.f32 %v922, %v931
    %v938 = vmul.f32 %v923, %v931
    %v939 = vmul.f32 %v924, %v931
    %v940 = vmul.f32 %v925, %v931
    %v941 = vmul.f32 %v926, %v931
    %v942 = vmul.f32 %v927, %v931
    %v943 = vmul.f32 %v928, %v931
    %v944 = vmul.f32 %v929, %v931
    %v945 = vld [vmem:[%s2 + $0x2] sm:$0x1]
    %v946 = vperm.slane %v945, 0
    %v947 = vadd.f32 %v932, %v946
    %v948 = vadd.f32 %v933, %v946
    %v949 = vadd.f32 %v934, %v946
    %v950 = vadd.f32 %v935, %v946
    %v951 = vadd.f32 %v936, %v946
    %v952 = vadd.f32 %v937, %v946
    %v953 = vadd.f32 %v938, %v946
    %v954 = vadd.f32 %v939, %v946
    %v955 = vadd.f32 %v940, %v946
    %v956 = vadd.f32 %v941, %v946
    %v957 = vadd.f32 %v942, %v946
    %v958 = vadd.f32 %v943, %v946
    %v959 = vadd.f32 %v944, %v946
    %v960 = vtanh.pop %v947
    %v961 = vtanh.pop %v948
    %v962 = vtanh.pop %v949
    %v963 = vtanh.pop %v950
    %v964 = vtanh.pop %v951
    %v965 = vtanh.pop %v952
    %v966 = vtanh.pop %v953
    %v967 = vtanh.pop %v954
    %v968 = vtanh.pop %v955
    %v969 = vtanh.pop %v956
    %v970 = vtanh.pop %v957
    %v971 = vtanh.pop %v958
    %v972 = vtanh.pop %v959
    %973 = vst [vmem:[#allocation2] sm:$0xff] %v960
    %974 = vst [vmem:[#allocation2 + $0x8] sm:$0xff] %v961
    %975 = vst [vmem:[#allocation2 + $0x10] sm:$0xff] %v962
    %976 = vst [vmem:[#allocation2 + $0x18] sm:$0xff] %v963
    %977 = vst [vmem:[#allocation2 + $0x20] sm:$0xff] %v964
    %978 = vst [vmem:[#allocation2 + $0x28] sm:$0xff] %v965
    %979 = vst [vmem:[#allocation2 + $0x30] sm:$0xff] %v966
    %980 = vst [vmem:[#allocation2 + $0x38] sm:$0xff] %v967
    %981 = vst [vmem:[#allocation2 + $0x40] sm:$0xff] %v968
    %982 = vst [vmem:[#allocation2 + $0x48] sm:$0xff] %v969
    %983 = vst [vmem:[#allocation2 + $0x50] sm:$0xff] %v970
    %984 = vst [vmem:[#allocation2 + $0x58] sm:$0xff] %v971
    %985 = vst [vmem:[#allocation2 + $0x60] sm:$0xff] %v972
    // Predicated region
    $region14: #{tpu_custom_call.1} parent=1 // pred_check
      _
    $region15: #{tpu_custom_call.1} parent=1 // pred_check_branch
      %987 = sbr.rel (0) target = $region17
    $region16: #{tpu_custom_call.1} parent=1 // pred_region
      %989 = vsyncadd [#allocation3], 0
      %s990 = sshll.u32 [#allocation2], 4
      %s991 = int_to_ptr.vmem [resolvable:$true] %s990
      %s992 = sshll.u32 %s3, 4
      %s993 = int_to_ptr.hbm [resolvable:$true] %s992
      %998 = dma.vmem_to_hbm [thread:$0]  %s991, 1664, %s993, [#allocation3], 128, 128, 8
    $region17: #{tpu_custom_call.1} parent=1 // pred_fallthru
      _
    // Predicated region
    $region18: #{tpu_custom_call.1} parent=1 // pred_check
      _
    $region19: #{tpu_custom_call.1} parent=1 // pred_check_branch
      %1000 = sbr.rel (0) target = $region21
    $region20: #{tpu_custom_call.1} parent=1 // pred_region
      %1002 = dma.done [#allocation3], 1664
    $region21: #{tpu_custom_call.1} parent=1 // pred_fallthru
      _
    %1003 = vsyncpa [#allocation3], 1

// kernel: tpu_custom_call.1
$region0: #{tpu_custom_call.1}
  #allocation0 [shape = 'u32[]', space=smem, size = 0x4, offset = 0x4, fixed_abs, tag = 'smem constant byte address 0x4 - core index']
  #allocation1 [shape = 'u32[72,128]{1,0:T(1,128)}', space=vmem, size = 0x9000, scoped, tag = 'internal scratch']
  %s0 = inlined_call_operand.vmem [shape: f32[100,32], index: 0, kind: input, shape index: {}]
  %s1 = inlined_call_operand.vmem [shape: f32[32,128], index: 1, kind: input, shape index: {}]
  %s2 = inlined_call_operand.vmem [shape: f32[8,128], index: 2, kind: input, shape index: {}]
  %s3 = inlined_call_operand.hbm [shape: f32[100,128], index: 3, kind: output, shape index: {}]
  %s4 = sld [smem:[#allocation0]]
  $region22: #{tpu_custom_call.1} parent=0
    _
  %s6 = ssub.s32 1, %s4
  %s7 = scalar_select 0, %s6, %s4
  $region1: #{tpu_custom_call.1} parent=0
    #allocation2 [shape = 'u8[53248]{0}', space=vmem, size = 0xd000, scoped, tag = 'output window, operand 0, single buffered']
    #allocation3 [shape = 's32[1]{0}', space=sflag, size = 0x4, scoped, tag = 'scoped memory for tpu_custom_call.1']
    %8 = vsyncpa [#allocation3], 0
    // Predicated region
    $region2: #{tpu_custom_call.1} parent=1 // pred_check
      _
    $region3: #{tpu_custom_call.1} parent=1 // pred_check_branch
      %10 = sbr.rel (0) target = $region5
    $region4: #{tpu_custom_call.1} parent=1 // pred_region
      _
    $region5: #{tpu_custom_call.1} parent=1 // pred_fallthru
      _
    // Predicated region
    $region6: #{tpu_custom_call.1} parent=1 // pred_check
      _
    $region7: #{tpu_custom_call.1} parent=1 // pred_check_branch
      %12 = sbr.rel (0) target = $region9
    $region8: #{tpu_custom_call.1} parent=1 // pred_region
      _
    $region9: #{tpu_custom_call.1} parent=1 // pred_fallthru
      _
    // Predicated region
    $region10: #{tpu_custom_call.1} parent=1 // pred_check
      _
    $region11: #{tpu_custom_call.1} parent=1 // pred_check_branch
      %14 = sbr.rel (0) target = $region13
    $region12: #{tpu_custom_call.1} parent=1 // pred_region
      _
    $region13: #{tpu_custom_call.1} parent=1 // pred_fallthru
      _
    %v15 = vld [vmem:[%s0] sm:$0xff]
    %v16 = vld [vmem:[%s0 + $0x8] sm:$0xff]
    %v17 = vld [vmem:[%s0 + $0x10] sm:$0xff]
    %v18 = vld [vmem:[%s0 + $0x18] sm:$0xff]
    %v19 = vld [vmem:[%s0 + $0x20] sm:$0xff]
    %v20 = vld [vmem:[%s0 + $0x28] sm:$0xff]
    %v21 = vld [vmem:[%s0 + $0x30] sm:$0xff]
    %v22 = vld [vmem:[%s0 + $0x38] sm:$0xff]
    %v23 = vld [vmem:[%s0 + $0x40] sm:$0xff]
    %v24 = vld [vmem:[%s0 + $0x48] sm:$0xff]
    %v25 = vld [vmem:[%s0 + $0x50] sm:$0xff]
    %v26 = vld [vmem:[%s0 + $0x58] sm:$0xff]
    %v27 = vld [vmem:[%s0 + $0x60] sm:$0xff]
    %v28 = vld [vmem:[%s1] sm:$0xff]
    %v29 = vld [vmem:[%s1 + $0x8] sm:$0xff]
    %v30 = vld [vmem:[%s1 + $0x10] sm:$0xff]
    %v31 = vld [vmem:[%s1 + $0x18] sm:$0xff]
    %v32 = vld [vmem:[%s2] sm:$0x1]
    %v33 = vperm.slane %v32, 0
    %vm34 = vcmask 261120
    %v36 = vsel %vm34, %v15, 0
    %v39 = vsel %vm34, %v16, 0
    %v42 = vsel %vm34, %v17, 0
    %v45 = vsel %vm34, %v18, 0
    %v48 = vsel %vm34, %v19, 0
    %v51 = vsel %vm34, %v20, 0
    %v54 = vsel %vm34, %v21, 0
    %v57 = vsel %vm34, %v22, 0
    %v60 = vsel %vm34, %v23, 0
    %v63 = vsel %vm34, %v24, 0
    %v66 = vsel %vm34, %v25, 0
    %v69 = vsel %vm34, %v26, 0
    %v72 = vsel %vm34, %v27, 0
    %74 = vmatpush.msra.mxu0 0.0
    %75 = vmatpush.msra.mxu0 0.0
    %76 = vmatpush.msra.mxu0 0.0
    %77 = vmatpush.msra.mxu0 0.0
    %78 = vmatpush.msra.mxu0 0.0
    %79 = vmatpush.msra.mxu0 0.0
    %80 = vmatpush.msra.mxu0 0.0
    %81 = vmatpush.msra.mxu0 0.0
    %82 = vmatpush.msra.mxu0 0.0
    %83 = vmatpush.msra.mxu0 0.0
    %84 = vmatpush.msra.mxu0 0.0
    %85 = vmatpush.msra.mxu0 0.0
    %v86 = vand.u32 %v31, 4294901760
    %87 = vmatpush.msra.mxu0 %v86
    %v88 = vand.u32 %v30, 4294901760
    %89 = vmatpush.msra.mxu0 %v88
    %v90 = vand.u32 %v29, 4294901760
    %91 = vmatpush.msra.mxu0 %v90
    %v92 = vand.u32 %v28, 4294901760
    %93 = vmatpush.msra.mxu0 %v92
    %v94 = vand.u32 %v36, 4294901760
    %v95 = vsub.f32 %v36, %v94
    %v96 = vand.u32 %v95, 4294901760
    %v97 = vsub.f32 %v95, %v96
    %v98 = vand.u32 %v97, 4294901760
    %99 = vmatmul.f32.gmra.mxu0 %v98
    %v100 = vpop.f32.mrf.mxu0
    %v101 = vadd.f32 %v33, %v100
    %v102 = vand.u32 %v39, 4294901760
    %v103 = vsub.f32 %v39, %v102
    %v104 = vand.u32 %v103, 4294901760
    %v105 = vsub.f32 %v103, %v104
    %v106 = vand.u32 %v105, 4294901760
    %107 = vmatmul.f32.gmra.mxu0 %v106
    %v108 = vpop.f32.mrf.mxu0
    %v109 = vadd.f32 %v33, %v108
    %v110 = vand.u32 %v42, 4294901760
    %v111 = vsub.f32 %v42, %v110
    %v112 = vand.u32 %v111, 4294901760
    %v113 = vsub.f32 %v111, %v112
    %v114 = vand.u32 %v113, 4294901760
    %115 = vmatmul.f32.gmra.mxu0 %v114
    %v116 = vpop.f32.mrf.mxu0
    %v117 = vadd.f32 %v33, %v116
    %v118 = vand.u32 %v45, 4294901760
    %v119 = vsub.f32 %v45, %v118
    %v120 = vand.u32 %v119, 4294901760
    %v121 = vsub.f32 %v119, %v120
    %v122 = vand.u32 %v121, 4294901760
    %123 = vmatmul.f32.gmra.mxu0 %v122
    %v124 = vpop.f32.mrf.mxu0
    %v125 = vadd.f32 %v33, %v124
    %v126 = vand.u32 %v48, 4294901760
    %v127 = vsub.f32 %v48, %v126
    %v128 = vand.u32 %v127, 4294901760
    %v129 = vsub.f32 %v127, %v128
    %v130 = vand.u32 %v129, 4294901760
    %131 = vmatmul.f32.gmra.mxu0 %v130
    %v132 = vpop.f32.mrf.mxu0
    %v133 = vadd.f32 %v33, %v132
    %v134 = vand.u32 %v51, 4294901760
    %v135 = vsub.f32 %v51, %v134
    %v136 = vand.u32 %v135, 4294901760
    %v137 = vsub.f32 %v135, %v136
    %v138 = vand.u32 %v137, 4294901760
    %139 = vmatmul.f32.gmra.mxu0 %v138
    %v140 = vpop.f32.mrf.mxu0
    %v141 = vadd.f32 %v33, %v140
    %v142 = vand.u32 %v54, 4294901760
    %v143 = vsub.f32 %v54, %v142
    %v144 = vand.u32 %v143, 4294901760
    %v145 = vsub.f32 %v143, %v144
    %v146 = vand.u32 %v145, 4294901760
    %147 = vmatmul.f32.gmra.mxu0 %v146
    %v148 = vpop.f32.mrf.mxu0
    %v149 = vadd.f32 %v33, %v148
    %v150 = vand.u32 %v57, 4294901760
    %v151 = vsub.f32 %v57, %v150
    %v152 = vand.u32 %v151, 4294901760
    %v153 = vsub.f32 %v151, %v152
    %v154 = vand.u32 %v153, 4294901760
    %155 = vmatmul.f32.gmra.mxu0 %v154
    %v156 = vpop.f32.mrf.mxu0
    %v157 = vadd.f32 %v33, %v156
    %v158 = vand.u32 %v60, 4294901760
    %v159 = vsub.f32 %v60, %v158
    %v160 = vand.u32 %v159, 4294901760
    %v161 = vsub.f32 %v159, %v160
    %v162 = vand.u32 %v161, 4294901760
    %163 = vmatmul.f32.gmra.mxu0 %v162
    %v164 = vpop.f32.mrf.mxu0
    %v165 = vadd.f32 %v33, %v164
    %v166 = vand.u32 %v63, 4294901760
    %v167 = vsub.f32 %v63, %v166
    %v168 = vand.u32 %v167, 4294901760
    %v169 = vsub.f32 %v167, %v168
    %v170 = vand.u32 %v169, 4294901760
    %171 = vmatmul.f32.gmra.mxu0 %v170
    %v172 = vpop.f32.mrf.mxu0
    %v173 = vadd.f32 %v33, %v172
    %v174 = vand.u32 %v66, 4294901760
    %v175 = vsub.f32 %v66, %v174
    %v176 = vand.u32 %v175, 4294901760
    %v177 = vsub.f32 %v175, %v176
    %v178 = vand.u32 %v177, 4294901760
    %179 = vmatmul.f32.gmra.mxu0 %v178
    %v180 = vpop.f32.mrf.mxu0
    %v181 = vadd.f32 %v33, %v180
    %v182 = vand.u32 %v69, 4294901760
    %v183 = vsub.f32 %v69, %v182
    %v184 = vand.u32 %v183, 4294901760
    %v185 = vsub.f32 %v183, %v184
    %v186 = vand.u32 %v185, 4294901760
    %187 = vmatmul.f32.gmra.mxu0 %v186
    %v188 = vpop.f32.mrf.mxu0
    %v189 = vadd.f32 %v33, %v188
    %v190 = vand.u32 %v72, 4294901760
    %v191 = vsub.f32 %v72, %v190
    %v192 = vand.u32 %v191, 4294901760
    %v193 = vsub.f32 %v191, %v192
    %v194 = vand.u32 %v193, 4294901760
    %195 = vmatmul.f32.gmra.mxu0 %v194
    %v196 = vpop.f32.mrf.mxu0
    %v197 = vadd.f32 %v33, %v196
    %198 = vdwg.mxu0
    %199 = vmatpush.msra.mxu0 0.0
    %200 = vmatpush.msra.mxu0 0.0
    %201 = vmatpush.msra.mxu0 0.0
    %202 = vmatpush.msra.mxu0 0.0
    %203 = vmatpush.msra.mxu0 0.0
    %204 = vmatpush.msra.mxu0 0.0
    %205 = vmatpush.msra.mxu0 0.0
    %206 = vmatpush.msra.mxu0 0.0
    %207 = vmatpush.msra.mxu0 0.0
    %208 = vmatpush.msra.mxu0 0.0
    %209 = vmatpush.msra.mxu0 0.0
    %210 = vmatpush.msra.mxu0 0.0
    %v211 = vand.u32 %v31, 4294901760
    %v212 = vsub.f32 %v31, %v211
    %v213 = vand.u32 %v212, 4294901760
    %v214 = vsub.f32 %v212, %v213
    %v215 = vand.u32 %v214, 4294901760
    %216 = vmatpush.msra.mxu0 %v215
    %v217 = vand.u32 %v30, 4294901760
    %v218 = vsub.f32 %v30, %v217
    %v219 = vand.u32 %v218, 4294901760
    %v220 = vsub.f32 %v218, %v219
    %v221 = vand.u32 %v220, 4294901760
    %222 = vmatpush.msra.mxu0 %v221
    %v223 = vand.u32 %v29, 4294901760
    %v224 = vsub.f32 %v29, %v223
    %v225 = vand.u32 %v224, 4294901760
    %v226 = vsub.f32 %v224, %v225
    %v227 = vand.u32 %v226, 4294901760
    %228 = vmatpush.msra.mxu0 %v227
    %v229 = vand.u32 %v28, 4294901760
    %v230 = vsub.f32 %v28, %v229
    %v231 = vand.u32 %v230, 4294901760
    %v232 = vsub.f32 %v230, %v231
    %v233 = vand.u32 %v232, 4294901760
    %234 = vmatpush.msra.mxu0 %v233
    %v235 = vand.u32 %v36, 4294901760
    %236 = vmatmul.f32.gmra.mxu0 %v235
    %v237 = vpop.f32.mrf.mxu0
    %v238 = vadd.f32 %v101, %v237
    %v239 = vand.u32 %v39, 4294901760
    %240 = vmatmul.f32.gmra.mxu0 %v239
    %v241 = vpop.f32.mrf.mxu0
    %v242 = vadd.f32 %v109, %v241
    %v243 = vand.u32 %v42, 4294901760
    %244 = vmatmul.f32.gmra.mxu0 %v243
    %v245 = vpop.f32.mrf.mxu0
    %v246 = vadd.f32 %v117, %v245
    %v247 = vand.u32 %v45, 4294901760
    %248 = vmatmul.f32.gmra.mxu0 %v247
    %v249 = vpop.f32.mrf.mxu0
    %v250 = vadd.f32 %v125, %v249
    %v251 = vand.u32 %v48, 4294901760
    %252 = vmatmul.f32.gmra.mxu0 %v251
    %v253 = vpop.f32.mrf.mxu0
    %v254 = vadd.f32 %v133, %v253
    %v255 = vand.u32 %v51, 4294901760
    %256 = vmatmul.f32.gmra.mxu0 %v255
    %v257 = vpop.f32.mrf.mxu0
    %v258 = vadd.f32 %v141, %v257
    %v259 = vand.u32 %v54, 4294901760
    %260 = vmatmul.f32.gmra.mxu0 %v259
    %v261 = vpop.f32.mrf.mxu0
    %v262 = vadd.f32 %v149, %v261
    %v263 = vand.u32 %v57, 4294901760
    %264 = vmatmul.f32.gmra.mxu0 %v263
    %v265 = vpop.f32.mrf.mxu0
    %v266 = vadd.f32 %v157, %v265
    %v267 = vand.u32 %v60, 4294901760
    %268 = vmatmul.f32.gmra.mxu0 %v267
    %v269 = vpop.f32.mrf.mxu0
    %v270 = vadd.f32 %v165, %v269
    %v271 = vand.u32 %v63, 4294901760
    %272 = vmatmul.f32.gmra.mxu0 %v271
    %v273 = vpop.f32.mrf.mxu0
    %v274 = vadd.f32 %v173, %v273
    %v275 = vand.u32 %v66, 4294901760
    %276 = vmatmul.f32.gmra.mxu0 %v275
    %v277 = vpop.f32.mrf.mxu0
    %v278 = vadd.f32 %v181, %v277
    %v279 = vand.u32 %v69, 4294901760
    %280 = vmatmul.f32.gmra.mxu0 %v279
    %v281 = vpop.f32.mrf.mxu0
    %v282 = vadd.f32 %v189, %v281
    %v283 = vand.u32 %v72, 4294901760
    %284 = vmatmul.f32.gmra.mxu0 %v283
    %v285 = vpop.f32.mrf.mxu0
    %v286 = vadd.f32 %v197, %v285
    %287 = vdwg.mxu0
    %288 = vmatpush.msra.mxu0 0.0
    %289 = vmatpush.msra.mxu0 0.0
    %290 = vmatpush.msra.mxu0 0.0
    %291 = vmatpush.msra.mxu0 0.0
    %292 = vmatpush.msra.mxu0 0.0
    %293 = vmatpush.msra.mxu0 0.0
    %294 = vmatpush.msra.mxu0 0.0
    %295 = vmatpush.msra.mxu0 0.0
    %296 = vmatpush.msra.mxu0 0.0
    %297 = vmatpush.msra.mxu0 0.0
    %298 = vmatpush.msra.mxu0 0.0
    %299 = vmatpush.msra.mxu0 0.0
    %v300 = vand.u32 %v31, 4294901760
    %v301 = vsub.f32 %v31, %v300
    %302 = vmatpush.msra.mxu0 %v301
    %v303 = vand.u32 %v30, 4294901760
    %v304 = vsub.f32 %v30, %v303
    %305 = vmatpush.msra.mxu0 %v304
    %v306 = vand.u32 %v29, 4294901760
    %v307 = vsub.f32 %v29, %v306
    %308 = vmatpush.msra.mxu0 %v307
    %v309 = vand.u32 %v28, 4294901760
    %v310 = vsub.f32 %v28, %v309
    %311 = vmatpush.msra.mxu0 %v310
    %v312 = vand.u32 %v36, 4294901760
    %v313 = vsub.f32 %v36, %v312
    %314 = vmatmul.f32.gmra.mxu0 %v313
    %v315 = vpop.f32.mrf.mxu0
    %v316 = vadd.f32 %v238, %v315
    %v317 = vand.u32 %v39, 4294901760
    %v318 = vsub.f32 %v39, %v317
    %319 = vmatmul.f32.gmra.mxu0 %v318
    %v320 = vpop.f32.mrf.mxu0
    %v321 = vadd.f32 %v242, %v320
    %v322 = vand.u32 %v42, 4294901760
    %v323 = vsub.f32 %v42, %v322
    %324 = vmatmul.f32.gmra.mxu0 %v323
    %v325 = vpop.f32.mrf.mxu0
    %v326 = vadd.f32 %v246, %v325
    %v327 = vand.u32 %v45, 4294901760
    %v328 = vsub.f32 %v45, %v327
    %329 = vmatmul.f32.gmra.mxu0 %v328
    %v330 = vpop.f32.mrf.mxu0
    %v331 = vadd.f32 %v250, %v330
    %v332 = vand.u32 %v48, 4294901760
    %v333 = vsub.f32 %v48, %v332
    %334 = vmatmul.f32.gmra.mxu0 %v333
    %v335 = vpop.f32.mrf.mxu0
    %v336 = vadd.f32 %v254, %v335
    %v337 = vand.u32 %v51, 4294901760
    %v338 = vsub.f32 %v51, %v337
    %339 = vmatmul.f32.gmra.mxu0 %v338
    %v340 = vpop.f32.mrf.mxu0
    %v341 = vadd.f32 %v258, %v340
    %v342 = vand.u32 %v54, 4294901760
    %v343 = vsub.f32 %v54, %v342
    %344 = vmatmul.f32.gmra.mxu0 %v343
    %v345 = vpop.f32.mrf.mxu0
    %v346 = vadd.f32 %v262, %v345
    %v347 = vand.u32 %v57, 4294901760
    %v348 = vsub.f32 %v57, %v347
    %349 = vmatmul.f32.gmra.mxu0 %v348
    %v350 = vpop.f32.mrf.mxu0
    %v351 = vadd.f32 %v266, %v350
    %v352 = vand.u32 %v60, 4294901760
    %v353 = vsub.f32 %v60, %v352
    %354 = vmatmul.f32.gmra.mxu0 %v353
    %v355 = vpop.f32.mrf.mxu0
    %v356 = vadd.f32 %v270, %v355
    %v357 = vand.u32 %v63, 4294901760
    %v358 = vsub.f32 %v63, %v357
    %359 = vmatmul.f32.gmra.mxu0 %v358
    %v360 = vpop.f32.mrf.mxu0
    %v361 = vadd.f32 %v274, %v360
    %v362 = vand.u32 %v66, 4294901760
    %v363 = vsub.f32 %v66, %v362
    %364 = vmatmul.f32.gmra.mxu0 %v363
    %v365 = vpop.f32.mrf.mxu0
    %v366 = vadd.f32 %v278, %v365
    %v367 = vand.u32 %v69, 4294901760
    %v368 = vsub.f32 %v69, %v367
    %369 = vmatmul.f32.gmra.mxu0 %v368
    %v370 = vpop.f32.mrf.mxu0
    %v371 = vadd.f32 %v282, %v370
    %v372 = vand.u32 %v72, 4294901760
    %v373 = vsub.f32 %v72, %v372
    %374 = vmatmul.f32.gmra.mxu0 %v373
    %v375 = vpop.f32.mrf.mxu0
    %v376 = vadd.f32 %v286, %v375
    %377 = vdwg.mxu0
    %378 = vmatpush.msra.mxu0 0.0
    %379 = vmatpush.msra.mxu0 0.0
    %380 = vmatpush.msra.mxu0 0.0
    %381 = vmatpush.msra.mxu0 0.0
    %382 = vmatpush.msra.mxu0 0.0
    %383 = vmatpush.msra.mxu0 0.0
    %384 = vmatpush.msra.mxu0 0.0
    %385 = vmatpush.msra.mxu0 0.0
    %386 = vmatpush.msra.mxu0 0.0
    %387 = vmatpush.msra.mxu0 0.0
    %388 = vmatpush.msra.mxu0 0.0
    %389 = vmatpush.msra.mxu0 0.0
    %v390 = vand.u32 %v31, 4294901760
    %391 = vmatpush.msra.mxu0 %v390
    %v392 = vand.u32 %v30, 4294901760
    %393 = vmatpush.msra.mxu0 %v392
    %v394 = vand.u32 %v29, 4294901760
    %395 = vmatpush.msra.mxu0 %v394
    %v396 = vand.u32 %v28, 4294901760
    %397 = vmatpush.msra.mxu0 %v396
    %v398 = vand.u32 %v36, 4294901760
    %v399 = vsub.f32 %v36, %v398
    %v400 = vand.u32 %v399, 4294901760
    %401 = vmatmul.f32.gmra.mxu0 %v400
    %v402 = vpop.f32.mrf.mxu0
    %v403 = vadd.f32 %v316, %v402
    %v404 = vand.u32 %v39, 4294901760
    %v405 = vsub.f32 %v39, %v404
    %v406 = vand.u32 %v405, 4294901760
    %407 = vmatmul.f32.gmra.mxu0 %v406
    %v408 = vpop.f32.mrf.mxu0
    %v409 = vadd.f32 %v321, %v408
    %v410 = vand.u32 %v42, 4294901760
    %v411 = vsub.f32 %v42, %v410
    %v412 = vand.u32 %v411, 4294901760
    %413 = vmatmul.f32.gmra.mxu0 %v412
    %v414 = vpop.f32.mrf.mxu0
    %v415 = vadd.f32 %v326, %v414
    %v416 = vand.u32 %v45, 4294901760
    %v417 = vsub.f32 %v45, %v416
    %v418 = vand.u32 %v417, 4294901760
    %419 = vmatmul.f32.gmra.mxu0 %v418
    %v420 = vpop.f32.mrf.mxu0
    %v421 = vadd.f32 %v331, %v420
    %v422 = vand.u32 %v48, 4294901760
    %v423 = vsub.f32 %v48, %v422
    %v424 = vand.u32 %v423, 4294901760
    %425 = vmatmul.f32.gmra.mxu0 %v424
    %v426 = vpop.f32.mrf.mxu0
    %v427 = vadd.f32 %v336, %v426
    %v428 = vand.u32 %v51, 4294901760
    %v429 = vsub.f32 %v51, %v428
    %v430 = vand.u32 %v429, 4294901760
    %431 = vmatmul.f32.gmra.mxu0 %v430
    %v432 = vpop.f32.mrf.mxu0
    %v433 = vadd.f32 %v341, %v432
    %v434 = vand.u32 %v54, 4294901760
    %v435 = vsub.f32 %v54, %v434
    %v436 = vand.u32 %v435, 4294901760
    %437 = vmatmul.f32.gmra.mxu0 %v436
    %v438 = vpop.f32.mrf.mxu0
    %v439 = vadd.f32 %v346, %v438
    %v440 = vand.u32 %v57, 4294901760
    %v441 = vsub.f32 %v57, %v440
    %v442 = vand.u32 %v441, 4294901760
    %443 = vmatmul.f32.gmra.mxu0 %v442
    %v444 = vpop.f32.mrf.mxu0
    %v445 = vadd.f32 %v351, %v444
    %v446 = vand.u32 %v60, 4294901760
    %v447 = vsub.f32 %v60, %v446
    %v448 = vand.u32 %v447, 4294901760
    %449 = vmatmul.f32.gmra.mxu0 %v448
    %v450 = vpop.f32.mrf.mxu0
    %v451 = vadd.f32 %v356, %v450
    %v452 = vand.u32 %v63, 4294901760
    %v453 = vsub.f32 %v63, %v452
    %v454 = vand.u32 %v453, 4294901760
    %455 = vmatmul.f32.gmra.mxu0 %v454
    %v456 = vpop.f32.mrf.mxu0
    %v457 = vadd.f32 %v361, %v456
    %v458 = vand.u32 %v66, 4294901760
    %v459 = vsub.f32 %v66, %v458
    %v460 = vand.u32 %v459, 4294901760
    %461 = vmatmul.f32.gmra.mxu0 %v460
    %v462 = vpop.f32.mrf.mxu0
    %v463 = vadd.f32 %v366, %v462
    %v464 = vand.u32 %v69, 4294901760
    %v465 = vsub.f32 %v69, %v464
    %v466 = vand.u32 %v465, 4294901760
    %467 = vmatmul.f32.gmra.mxu0 %v466
    %v468 = vpop.f32.mrf.mxu0
    %v469 = vadd.f32 %v371, %v468
    %v470 = vand.u32 %v72, 4294901760
    %v471 = vsub.f32 %v72, %v470
    %v472 = vand.u32 %v471, 4294901760
    %473 = vmatmul.f32.gmra.mxu0 %v472
    %v474 = vpop.f32.mrf.mxu0
    %v475 = vadd.f32 %v376, %v474
    %476 = vdwg.mxu0
    %477 = vmatpush.msra.mxu0 0.0
    %478 = vmatpush.msra.mxu0 0.0
    %479 = vmatpush.msra.mxu0 0.0
    %480 = vmatpush.msra.mxu0 0.0
    %481 = vmatpush.msra.mxu0 0.0
    %482 = vmatpush.msra.mxu0 0.0
    %483 = vmatpush.msra.mxu0 0.0
    %484 = vmatpush.msra.mxu0 0.0
    %485 = vmatpush.msra.mxu0 0.0
    %486 = vmatpush.msra.mxu0 0.0
    %487 = vmatpush.msra.mxu0 0.0
    %488 = vmatpush.msra.mxu0 0.0
    %v489 = vand.u32 %v31, 4294901760
    %v490 = vsub.f32 %v31, %v489
    %v491 = vand.u32 %v490, 4294901760
    %492 = vmatpush.msra.mxu0 %v491
    %v493 = vand.u32 %v30, 4294901760
    %v494 = vsub.f32 %v30, %v493
    %v495 = vand.u32 %v494, 4294901760
    %496 = vmatpush.msra.mxu0 %v495
    %v497 = vand.u32 %v29, 4294901760
    %v498 = vsub.f32 %v29, %v497
    %v499 = vand.u32 %v498, 4294901760
    %500 = vmatpush.msra.mxu0 %v499
    %v501 = vand.u32 %v28, 4294901760
    %v502 = vsub.f32 %v28, %v501
    %v503 = vand.u32 %v502, 4294901760
    %504 = vmatpush.msra.mxu0 %v503
    %v505 = vand.u32 %v36, 4294901760
    %506 = vmatmul.f32.gmra.mxu0 %v505
    %v507 = vpop.f32.mrf.mxu0
    %v508 = vadd.f32 %v403, %v507
    %v509 = vand.u32 %v39, 4294901760
    %510 = vmatmul.f32.gmra.mxu0 %v509
    %v511 = vpop.f32.mrf.mxu0
    %v512 = vadd.f32 %v409, %v511
    %v513 = vand.u32 %v42, 4294901760
    %514 = vmatmul.f32.gmra.mxu0 %v513
    %v515 = vpop.f32.mrf.mxu0
    %v516 = vadd.f32 %v415, %v515
    %v517 = vand.u32 %v45, 4294901760
    %518 = vmatmul.f32.gmra.mxu0 %v517
    %v519 = vpop.f32.mrf.mxu0
    %v520 = vadd.f32 %v421, %v519
    %v521 = vand.u32 %v48, 4294901760
    %522 = vmatmul.f32.gmra.mxu0 %v521
    %v523 = vpop.f32.mrf.mxu0
    %v524 = vadd.f32 %v427, %v523
    %v525 = vand.u32 %v51, 4294901760
    %526 = vmatmul.f32.gmra.mxu0 %v525
    %v527 = vpop.f32.mrf.mxu0
    %v528 = vadd.f32 %v433, %v527
    %v529 = vand.u32 %v54, 4294901760
    %530 = vmatmul.f32.gmra.mxu0 %v529
    %v531 = vpop.f32.mrf.mxu0
    %v532 = vadd.f32 %v439, %v531
    %v533 = vand.u32 %v57, 4294901760
    %534 = vmatmul.f32.gmra.mxu0 %v533
    %v535 = vpop.f32.mrf.mxu0
    %v536 = vadd.f32 %v445, %v535
    %v537 = vand.u32 %v60, 4294901760
    %538 = vmatmul.f32.gmra.mxu0 %v537
    %v539 = vpop.f32.mrf.mxu0
    %v540 = vadd.f32 %v451, %v539
    %v541 = vand.u32 %v63, 4294901760
    %542 = vmatmul.f32.gmra.mxu0 %v541
    %v543 = vpop.f32.mrf.mxu0
    %v544 = vadd.f32 %v457, %v543
    %v545 = vand.u32 %v66, 4294901760
    %546 = vmatmul.f32.gmra.mxu0 %v545
    %v547 = vpop.f32.mrf.mxu0
    %v548 = vadd.f32 %v463, %v547
    %v549 = vand.u32 %v69, 4294901760
    %550 = vmatmul.f32.gmra.mxu0 %v549
    %v551 = vpop.f32.mrf.mxu0
    %v552 = vadd.f32 %v469, %v551
    %v553 = vand.u32 %v72, 4294901760
    %554 = vmatmul.f32.gmra.mxu0 %v553
    %v555 = vpop.f32.mrf.mxu0
    %v556 = vadd.f32 %v475, %v555
    %557 = vdwg.mxu0
    %558 = vmatpush.msra.mxu0 0.0
    %559 = vmatpush.msra.mxu0 0.0
    %560 = vmatpush.msra.mxu0 0.0
    %561 = vmatpush.msra.mxu0 0.0
    %562 = vmatpush.msra.mxu0 0.0
    %563 = vmatpush.msra.mxu0 0.0
    %564 = vmatpush.msra.mxu0 0.0
    %565 = vmatpush.msra.mxu0 0.0
    %566 = vmatpush.msra.mxu0 0.0
    %567 = vmatpush.msra.mxu0 0.0
    %568 = vmatpush.msra.mxu0 0.0
    %569 = vmatpush.msra.mxu0 0.0
    %v570 = vand.u32 %v31, 4294901760
    %571 = vmatpush.msra.mxu0 %v570
    %v572 = vand.u32 %v30, 4294901760
    %573 = vmatpush.msra.mxu0 %v572
    %v574 = vand.u32 %v29, 4294901760
    %575 = vmatpush.msra.mxu0 %v574
    %v576 = vand.u32 %v28, 4294901760
    %577 = vmatpush.msra.mxu0 %v576
    %v578 = vand.u32 %v36, 4294901760
    %579 = vmatmul.f32.gmra.mxu0 %v578
    %v580 = vpop.f32.mrf.mxu0
    %v581 = vadd.f32 %v508, %v580
    %v582 = vand.u32 %v39, 4294901760
    %583 = vmatmul.f32.gmra.mxu0 %v582
    %v584 = vpop.f32.mrf.mxu0
    %v585 = vadd.f32 %v512, %v584
    %v586 = vand.u32 %v42, 4294901760
    %587 = vmatmul.f32.gmra.mxu0 %v586
    %v588 = vpop.f32.mrf.mxu0
    %v589 = vadd.f32 %v516, %v588
    %v590 = vand.u32 %v45, 4294901760
    %591 = vmatmul.f32.gmra.mxu0 %v590
    %v592 = vpop.f32.mrf.mxu0
    %v593 = vadd.f32 %v520, %v592
    %v594 = vand.u32 %v48, 4294901760
    %595 = vmatmul.f32.gmra.mxu0 %v594
    %v596 = vpop.f32.mrf.mxu0
    %v597 = vadd.f32 %v524, %v596
    %v598 = vand.u32 %v51, 4294901760
    %599 = vmatmul.f32.gmra.mxu0 %v598
    %v600 = vpop.f32.mrf.mxu0
    %v601 = vadd.f32 %v528, %v600
    %v602 = vand.u32 %v54, 4294901760
    %603 = vmatmul.f32.gmra.mxu0 %v602
    %v604 = vpop.f32.mrf.mxu0
    %v605 = vadd.f32 %v532, %v604
    %v606 = vand.u32 %v57, 4294901760
    %607 = vmatmul.f32.gmra.mxu0 %v606
    %v608 = vpop.f32.mrf.mxu0
    %v609 = vadd.f32 %v536, %v608
    %v610 = vand.u32 %v60, 4294901760
    %611 = vmatmul.f32.gmra.mxu0 %v610
    %v612 = vpop.f32.mrf.mxu0
    %v613 = vadd.f32 %v540, %v612
    %v614 = vand.u32 %v63, 4294901760
    %615 = vmatmul.f32.gmra.mxu0 %v614
    %v616 = vpop.f32.mrf.mxu0
    %v617 = vadd.f32 %v544, %v616
    %v618 = vand.u32 %v66, 4294901760
    %619 = vmatmul.f32.gmra.mxu0 %v618
    %v620 = vpop.f32.mrf.mxu0
    %v621 = vadd.f32 %v548, %v620
    %v622 = vand.u32 %v69, 4294901760
    %623 = vmatmul.f32.gmra.mxu0 %v622
    %v624 = vpop.f32.mrf.mxu0
    %v625 = vadd.f32 %v552, %v624
    %v626 = vand.u32 %v72, 4294901760
    %627 = vmatmul.f32.gmra.mxu0 %v626
    %v628 = vpop.f32.mrf.mxu0
    %v629 = vadd.f32 %v556, %v628
    %630 = vdwg.mxu0
    %631 = vadd.xlane.f32.xlu0 %v581
    %v632 = vpop.xlane.xlu0 %631
    %633 = vadd.xlane.f32.xlu0 %v585
    %v634 = vpop.xlane.xlu0 %633
    %635 = vadd.xlane.f32.xlu0 %v589
    %v636 = vpop.xlane.xlu0 %635
    %637 = vadd.xlane.f32.xlu0 %v593
    %v638 = vpop.xlane.xlu0 %637
    %639 = vadd.xlane.f32.xlu0 %v597
    %v640 = vpop.xlane.xlu0 %639
    %641 = vadd.xlane.f32.xlu0 %v601
    %v642 = vpop.xlane.xlu0 %641
    %643 = vadd.xlane.f32.xlu0 %v605
    %v644 = vpop.xlane.xlu0 %643
    %645 = vadd.xlane.f32.xlu0 %v609
    %v646 = vpop.xlane.xlu0 %645
    %647 = vadd.xlane.f32.xlu0 %v613
    %v648 = vpop.xlane.xlu0 %647
    %649 = vadd.xlane.f32.xlu0 %v617
    %v650 = vpop.xlane.xlu0 %649
    %651 = vadd.xlane.f32.xlu0 %v621
    %v652 = vpop.xlane.xlu0 %651
    %653 = vadd.xlane.f32.xlu0 %v625
    %v654 = vpop.xlane.xlu0 %653
    %655 = vadd.xlane.f32.xlu0 %v629
    %v656 = vpop.xlane.xlu0 %655
    %v657 = vmul.f32 %v632, 0.03125
    %v658 = vmul.f32 %v634, 0.03125
    %v659 = vmul.f32 %v636, 0.03125
    %v660 = vmul.f32 %v638, 0.03125
    %v661 = vmul.f32 %v640, 0.03125
    %v662 = vmul.f32 %v642, 0.03125
    %v663 = vmul.f32 %v644, 0.03125
    %v664 = vmul.f32 %v646, 0.03125
    %v665 = vmul.f32 %v648, 0.03125
    %v666 = vmul.f32 %v650, 0.03125
    %v667 = vmul.f32 %v652, 0.03125
    %v668 = vmul.f32 %v654, 0.03125
    %v669 = vmul.f32 %v656, 0.03125
    %v670 = vmul.f32 %v581, %v581
    %v671 = vmul.f32 %v585, %v585
    %v672 = vmul.f32 %v589, %v589
    %v673 = vmul.f32 %v593, %v593
    %v674 = vmul.f32 %v597, %v597
    %v675 = vmul.f32 %v601, %v601
    %v676 = vmul.f32 %v605, %v605
    %v677 = vmul.f32 %v609, %v609
    %v678 = vmul.f32 %v613, %v613
    %v679 = vmul.f32 %v617, %v617
    %v680 = vmul.f32 %v621, %v621
    %v681 = vmul.f32 %v625, %v625
    %v682 = vmul.f32 %v629, %v629
    %683 = vadd.xlane.f32.xlu0 %v670
    %v684 = vpop.xlane.xlu0 %683
    %685 = vadd.xlane.f32.xlu0 %v671
    %v686 = vpop.xlane.xlu0 %685
    %687 = vadd.xlane.f32.xlu0 %v672
    %v688 = vpop.xlane.xlu0 %687
    %689 = vadd.xlane.f32.xlu0 %v673
    %v690 = vpop.xlane.xlu0 %689
    %691 = vadd.xlane.f32.xlu0 %v674
    %v692 = vpop.xlane.xlu0 %691
    %693 = vadd.xlane.f32.xlu0 %v675
    %v694 = vpop.xlane.xlu0 %693
    %695 = vadd.xlane.f32.xlu0 %v676
    %v696 = vpop.xlane.xlu0 %695
    %697 = vadd.xlane.f32.xlu0 %v677
    %v698 = vpop.xlane.xlu0 %697
    %699 = vadd.xlane.f32.xlu0 %v678
    %v700 = vpop.xlane.xlu0 %699
    %701 = vadd.xlane.f32.xlu0 %v679
    %v702 = vpop.xlane.xlu0 %701
    %703 = vadd.xlane.f32.xlu0 %v680
    %v704 = vpop.xlane.xlu0 %703
    %705 = vadd.xlane.f32.xlu0 %v681
    %v706 = vpop.xlane.xlu0 %705
    %707 = vadd.xlane.f32.xlu0 %v682
    %v708 = vpop.xlane.xlu0 %707
    %v709 = vmul.f32 %v684, 0.03125
    %v710 = vmul.f32 %v686, 0.03125
    %v711 = vmul.f32 %v688, 0.03125
    %v712 = vmul.f32 %v690, 0.03125
    %v713 = vmul.f32 %v692, 0.03125
    %v714 = vmul.f32 %v694, 0.03125
    %v715 = vmul.f32 %v696, 0.03125
    %v716 = vmul.f32 %v698, 0.03125
    %v717 = vmul.f32 %v700, 0.03125
    %v718 = vmul.f32 %v702, 0.03125
    %v719 = vmul.f32 %v704, 0.03125
    %v720 = vmul.f32 %v706, 0.03125
    %v721 = vmul.f32 %v708, 0.03125
    %v722 = vmul.f32 %v657, %v657
    %v723 = vmul.f32 %v658, %v658
    %v724 = vmul.f32 %v659, %v659
    %v725 = vmul.f32 %v660, %v660
    %v726 = vmul.f32 %v661, %v661
    %v727 = vmul.f32 %v662, %v662
    %v728 = vmul.f32 %v663, %v663
    %v729 = vmul.f32 %v664, %v664
    %v730 = vmul.f32 %v665, %v665
    %v731 = vmul.f32 %v666, %v666
    %v732 = vmul.f32 %v667, %v667
    %v733 = vmul.f32 %v668, %v668
    %v734 = vmul.f32 %v669, %v669
    %v735 = vsub.f32 %v709, %v722
    %v736 = vsub.f32 %v710, %v723
    %v737 = vsub.f32 %v711, %v724
    %v738 = vsub.f32 %v712, %v725
    %v739 = vsub.f32 %v713, %v726
    %v740 = vsub.f32 %v714, %v727
    %v741 = vsub.f32 %v715, %v728
    %v742 = vsub.f32 %v716, %v729
    %v743 = vsub.f32 %v717, %v730
    %v744 = vsub.f32 %v718, %v731
    %v745 = vsub.f32 %v719, %v732
    %v746 = vsub.f32 %v720, %v733
    %v747 = vsub.f32 %v721, %v734
    %v748 = vmax.f32 %v735, 0.0
    %v749 = vmax.f32 %v736, 0.0
    %v750 = vmax.f32 %v737, 0.0
    %v751 = vmax.f32 %v738, 0.0
    %v752 = vmax.f32 %v739, 0.0
    %v753 = vmax.f32 %v740, 0.0
    %v754 = vmax.f32 %v741, 0.0
    %v755 = vmax.f32 %v742, 0.0
    %v756 = vmax.f32 %v743, 0.0
    %v757 = vmax.f32 %v744, 0.0
    %v758 = vmax.f32 %v745, 0.0
    %v759 = vmax.f32 %v746, 0.0
    %v760 = vmax.f32 %v747, 0.0
    %v761 = vsub.f32 %v581, %v657
    %v762 = vsub.f32 %v585, %v658
    %v763 = vsub.f32 %v589, %v659
    %v764 = vsub.f32 %v593, %v660
    %v765 = vsub.f32 %v597, %v661
    %v766 = vsub.f32 %v601, %v662
    %v767 = vsub.f32 %v605, %v663
    %v768 = vsub.f32 %v609, %v664
    %v769 = vsub.f32 %v613, %v665
    %v770 = vsub.f32 %v617, %v666
    %v771 = vsub.f32 %v621, %v667
    %v772 = vsub.f32 %v625, %v668
    %v773 = vsub.f32 %v629, %v669
    %v774 = vadd.f32 %v748, 1e-05
    %v775 = vadd.f32 %v749, 1e-05
    %v776 = vadd.f32 %v750, 1e-05
    %v777 = vadd.f32 %v751, 1e-05
    %v778 = vadd.f32 %v752, 1e-05
    %v779 = vadd.f32 %v753, 1e-05
    %v780 = vadd.f32 %v754, 1e-05
    %v781 = vadd.f32 %v755, 1e-05
    %v782 = vadd.f32 %v756, 1e-05
    %v783 = vadd.f32 %v757, 1e-05
    %v784 = vadd.f32 %v758, 1e-05
    %v785 = vadd.f32 %v759, 1e-05
    %v786 = vadd.f32 %v760, 1e-05
    %v787 = vrsqrt.pop %v774
    %v788 = vmul.f32 %v787, %v774
    %v789 = vmul.f32 %v788, %v787
    %v790 = vmul.f32 0.5, %v789
    %v791 = vsub.f32 1.5, %v790
    %v792 = vmul.f32 %v787, %v791
    %vm793 = vweird.f32 %v774
    %vm794 = vweird.f32 %v787
    %vm795 = vmor %vm793, %vm794
    %v796 = vsel %vm795, %v787, %v792
    %v797 = vrsqrt.pop %v775
    %v798 = vmul.f32 %v797, %v775
    %v799 = vmul.f32 %v798, %v797
    %v800 = vmul.f32 0.5, %v799
    %v801 = vsub.f32 1.5, %v800
    %v802 = vmul.f32 %v797, %v801
    %vm803 = vweird.f32 %v775
    %vm804 = vweird.f32 %v797
    %vm805 = vmor %vm803, %vm804
    %v806 = vsel %vm805, %v797, %v802
    %v807 = vrsqrt.pop %v776
    %v808 = vmul.f32 %v807, %v776
    %v809 = vmul.f32 %v808, %v807
    %v810 = vmul.f32 0.5, %v809
    %v811 = vsub.f32 1.5, %v810
    %v812 = vmul.f32 %v807, %v811
    %vm813 = vweird.f32 %v776
    %vm814 = vweird.f32 %v807
    %vm815 = vmor %vm813, %vm814
    %v816 = vsel %vm815, %v807, %v812
    %v817 = vrsqrt.pop %v777
    %v818 = vmul.f32 %v817, %v777
    %v819 = vmul.f32 %v818, %v817
    %v820 = vmul.f32 0.5, %v819
    %v821 = vsub.f32 1.5, %v820
    %v822 = vmul.f32 %v817, %v821
    %vm823 = vweird.f32 %v777
    %vm824 = vweird.f32 %v817
    %vm825 = vmor %vm823, %vm824
    %v826 = vsel %vm825, %v817, %v822
    %v827 = vrsqrt.pop %v778
    %v828 = vmul.f32 %v827, %v778
    %v829 = vmul.f32 %v828, %v827
    %v830 = vmul.f32 0.5, %v829
    %v831 = vsub.f32 1.5, %v830
    %v832 = vmul.f32 %v827, %v831
    %vm833 = vweird.f32 %v778
    %vm834 = vweird.f32 %v827
    %vm835 = vmor %vm833, %vm834
    %v836 = vsel %vm835, %v827, %v832
    %v837 = vrsqrt.pop %v779
    %v838 = vmul.f32 %v837, %v779
    %v839 = vmul.f32 %v838, %v837
    %v840 = vmul.f32 0.5, %v839
    %v841 = vsub.f32 1.5, %v840
    %v842 = vmul.f32 %v837, %v841
    %vm843 = vweird.f32 %v779
    %vm844 = vweird.f32 %v837
    %vm845 = vmor %vm843, %vm844
    %v846 = vsel %vm845, %v837, %v842
    %v847 = vrsqrt.pop %v780
    %v848 = vmul.f32 %v847, %v780
    %v849 = vmul.f32 %v848, %v847
    %v850 = vmul.f32 0.5, %v849
    %v851 = vsub.f32 1.5, %v850
    %v852 = vmul.f32 %v847, %v851
    %vm853 = vweird.f32 %v780
    %vm854 = vweird.f32 %v847
    %vm855 = vmor %vm853, %vm854
    %v856 = vsel %vm855, %v847, %v852
    %v857 = vrsqrt.pop %v781
    %v858 = vmul.f32 %v857, %v781
    %v859 = vmul.f32 %v858, %v857
    %v860 = vmul.f32 0.5, %v859
    %v861 = vsub.f32 1.5, %v860
    %v862 = vmul.f32 %v857, %v861
    %vm863 = vweird.f32 %v781
    %vm864 = vweird.f32 %v857
    %vm865 = vmor %vm863, %vm864
    %v866 = vsel %vm865, %v857, %v862
    %v867 = vrsqrt.pop %v782
    %v868 = vmul.f32 %v867, %v782
    %v869 = vmul.f32 %v868, %v867
    %v870 = vmul.f32 0.5, %v869
    %v871 = vsub.f32 1.5, %v870
    %v872 = vmul.f32 %v867, %v871
    %vm873 = vweird.f32 %v782
    %vm874 = vweird.f32 %v867
    %vm875 = vmor %vm873, %vm874
    %v876 = vsel %vm875, %v867, %v872
    %v877 = vrsqrt.pop %v783
    %v878 = vmul.f32 %v877, %v783
    %v879 = vmul.f32 %v878, %v877
    %v880 = vmul.f32 0.5, %v879
    %v881 = vsub.f32 1.5, %v880
    %v882 = vmul.f32 %v877, %v881
    %vm883 = vweird.f32 %v783
    %vm884 = vweird.f32 %v877
    %vm885 = vmor %vm883, %vm884
    %v886 = vsel %vm885, %v877, %v882
    %v887 = vrsqrt.pop %v784
    %v888 = vmul.f32 %v887, %v784
    %v889 = vmul.f32 %v888, %v887
    %v890 = vmul.f32 0.5, %v889
    %v891 = vsub.f32 1.5, %v890
    %v892 = vmul.f32 %v887, %v891
    %vm893 = vweird.f32 %v784
    %vm894 = vweird.f32 %v887
    %vm895 = vmor %vm893, %vm894
    %v896 = vsel %vm895, %v887, %v892
    %v897 = vrsqrt.pop %v785
    %v898 = vmul.f32 %v897, %v785
    %v899 = vmul.f32 %v898, %v897
    %v900 = vmul.f32 0.5, %v899
    %v901 = vsub.f32 1.5, %v900
    %v902 = vmul.f32 %v897, %v901
    %vm903 = vweird.f32 %v785
    %vm904 = vweird.f32 %v897
    %vm905 = vmor %vm903, %vm904
    %v906 = vsel %vm905, %v897, %v902
    %v907 = vrsqrt.pop %v786
    %v908 = vmul.f32 %v907, %v786
    %v909 = vmul.f32 %v908, %v907
    %v910 = vmul.f32 0.5, %v909
    %v911 = vsub.f32 1.5, %v910
    %v912 = vmul.f32 %v907, %v911
    %vm913 = vweird.f32 %v786
    %vm914 = vweird.f32 %v907
    %vm915 = vmor %vm913, %vm914
    %v916 = vsel %vm915, %v907, %v912
    %v917 = vmul.f32 %v761, %v796
    %v918 = vmul.f32 %v762, %v806
    %v919 = vmul.f32 %v763, %v816
    %v920 = vmul.f32 %v764, %v826
    %v921 = vmul.f32 %v765, %v836
    %v922 = vmul.f32 %v766, %v846
    %v923 = vmul.f32 %v767, %v856
    %v924 = vmul.f32 %v768, %v866
    %v925 = vmul.f32 %v769, %v876
    %v926 = vmul.f32 %v770, %v886
    %v927 = vmul.f32 %v771, %v896
    %v928 = vmul.f32 %v772, %v906
    %v929 = vmul.f32 %v773, %v916
    %v930 = vld [vmem:[%s2 + $0x1] sm:$0x1]
    %v931 = vperm.slane %v930, 0
    %v932 = vmul.f32 %v917, %v931
    %v933 = vmul.f32 %v918, %v931
    %v934 = vmul.f32 %v919, %v931
    %v935 = vmul.f32 %v920, %v931
    %v936 = vmul.f32 %v921, %v931
    %v937 = vmul.f32 %v922, %v931
    %v938 = vmul.f32 %v923, %v931
    %v939 = vmul.f32 %v924, %v931
    %v940 = vmul.f32 %v925, %v931
    %v941 = vmul.f32 %v926, %v931
    %v942 = vmul.f32 %v927, %v931
    %v943 = vmul.f32 %v928, %v931
    %v944 = vmul.f32 %v929, %v931
    %v945 = vld [vmem:[%s2 + $0x2] sm:$0x1]
    %v946 = vperm.slane %v945, 0
    %v947 = vadd.f32 %v932, %v946
    %v948 = vadd.f32 %v933, %v946
    %v949 = vadd.f32 %v934, %v946
    %v950 = vadd.f32 %v935, %v946
    %v951 = vadd.f32 %v936, %v946
    %v952 = vadd.f32 %v937, %v946
    %v953 = vadd.f32 %v938, %v946
    %v954 = vadd.f32 %v939, %v946
    %v955 = vadd.f32 %v940, %v946
    %v956 = vadd.f32 %v941, %v946
    %v957 = vadd.f32 %v942, %v946
    %v958 = vadd.f32 %v943, %v946
    %v959 = vadd.f32 %v944, %v946
    %v960 = vtanh.pop %v947
    %v961 = vtanh.pop %v948
    %v962 = vtanh.pop %v949
    %v963 = vtanh.pop %v950
    %v964 = vtanh.pop %v951
    %v965 = vtanh.pop %v952
    %v966 = vtanh.pop %v953
    %v967 = vtanh.pop %v954
    %v968 = vtanh.pop %v955
    %v969 = vtanh.pop %v956
    %v970 = vtanh.pop %v957
    %v971 = vtanh.pop %v958
    %v972 = vtanh.pop %v959
    %973 = vst [vmem:[#allocation2] sm:$0xff] %v960
    %974 = vst [vmem:[#allocation2 + $0x8] sm:$0xff] %v961
    %975 = vst [vmem:[#allocation2 + $0x10] sm:$0xff] %v962
    %976 = vst [vmem:[#allocation2 + $0x18] sm:$0xff] %v963
    %977 = vst [vmem:[#allocation2 + $0x20] sm:$0xff] %v964
    %978 = vst [vmem:[#allocation2 + $0x28] sm:$0xff] %v965
    %979 = vst [vmem:[#allocation2 + $0x30] sm:$0xff] %v966
    %980 = vst [vmem:[#allocation2 + $0x38] sm:$0xff] %v967
    %981 = vst [vmem:[#allocation2 + $0x40] sm:$0xff] %v968
    %982 = vst [vmem:[#allocation2 + $0x48] sm:$0xff] %v969
    %983 = vst [vmem:[#allocation2 + $0x50] sm:$0xff] %v970
    %984 = vst [vmem:[#allocation2 + $0x58] sm:$0xff] %v971
    %985 = vst [vmem:[#allocation2 + $0x60] sm:$0xff] %v972
    // Predicated region
    $region14: #{tpu_custom_call.1} parent=1 // pred_check
      _
    $region15: #{tpu_custom_call.1} parent=1 // pred_check_branch
      %987 = sbr.rel (0) target = $region17
    $region16: #{tpu_custom_call.1} parent=1 // pred_region
      %989 = vsyncadd [#allocation3], 0
      %s990 = sshll.u32 [#allocation2], 4
      %s991 = int_to_ptr.vmem [resolvable:$true] %s990
      %s992 = sshll.u32 %s3, 4
      %s993 = int_to_ptr.hbm [resolvable:$true] %s992
      %998 = dma.vmem_to_hbm [thread:$0]  %s991, 1664, %s993, [#allocation3], 128, 128, 8
    $region17: #{tpu_custom_call.1} parent=1 // pred_fallthru
      _
    // Predicated region
    $region18: #{tpu_custom_call.1} parent=1 // pred_check
      _
    $region19: #{tpu_custom_call.1} parent=1 // pred_check_branch
      %1000 = sbr.rel (0) target = $region21
    $region20: #{tpu_custom_call.1} parent=1 // pred_region
      %1002 = dma.done [#allocation3], 1664
    $region21: #{tpu_custom_call.1} parent=1 // pred_fallthru
      _
    %1003 = vsyncpa [#allocation3], 1

</llo_original>
